<compile_context>
chip_gen: v5e
topology: v5e:2x2
jax: 0.10.0
libtpu: 0.0.40
codegen_flags: <defaults>
</compile_context>

<pallas_src>
import functools

import jax
import jax.numpy as jnp
from jax.experimental import pallas as pl
from jax.experimental.pallas import tpu as pltpu


# --------------------------------------------------------------------------- #
# small helpers
# --------------------------------------------------------------------------- #
_VMEM_LIMIT = 32 * 1024 * 1024


def _round_up(x, m):
    return ((x + m - 1) // m) * m


def _pick_tile(size, candidates):
    for c in candidates:
        if size % c == 0:
            return c
    return candidates[-1]


def _pad2d(x, rows, cols):
    pr, pc = rows - x.shape[0], cols - x.shape[1]
    if pr == 0 and pc == 0:
        return x
    return jnp.pad(x, ((0, pr), (0, pc)))


# --------------------------------------------------------------------------- #
# Pallas kernel 1: tiled matmul with fused BN affine (+ residual, + ReLU)
# --------------------------------------------------------------------------- #
def _mm_affine_kernel(a_ref, w_ref, s_ref, b_ref, *rest, relu, has_res, multi_k):
    if multi_k:
        if has_res:
            r_ref, o_ref, acc_ref = rest
        else:
            o_ref, acc_ref = rest
            r_ref = None
    else:
        if has_res:
            r_ref, o_ref = rest
        else:
            (o_ref,) = rest
            r_ref = None
        acc_ref = None

    if multi_k:
        @pl.when(pl.program_id(2) == 0)
        def _init():
            acc_ref[...] = jnp.zeros_like(acc_ref)

        acc_ref[...] += jnp.dot(a_ref[...], w_ref[...],
                                preferred_element_type=jnp.float32)

        @pl.when(pl.program_id(2) == pl.num_programs(2) - 1)
        def _finalize():
            y = acc_ref[...] * s_ref[...] + b_ref[...]
            if has_res:
                y = y + r_ref[...].astype(jnp.float32)
            if relu:
                y = jnp.maximum(y, 0.0)
            o_ref[...] = y.astype(o_ref.dtype)
    else:
        # Single K tile: no accumulator scratch, no init/finalize gating.
        y = jnp.dot(a_ref[...], w_ref[...], preferred_element_type=jnp.float32)
        y = y * s_ref[...] + b_ref[...]
        if has_res:
            y = y + r_ref[...].astype(jnp.float32)
        if relu:
            y = jnp.maximum(y, 0.0)
        o_ref[...] = y.astype(o_ref.dtype)


def matmul_affine(a, w, scale, shift, *, relu, residual=None,
                  out_dtype=jnp.bfloat16):
    """(M, K) @ (K, N) * scale + shift [+ residual] [-> ReLU], tiled for the MXU."""
    m, k = a.shape
    n = w.shape[1]
    mp = _round_up(m, 8)
    kp = _round_up(k, 128)
    np_ = _round_up(n, 128)
    tm = _pick_tile(mp, (512, 256, 128, 64, 32, 16, 8))
    tk = _pick_tile(kp, (512, 384, 256, 128))
    tn = _pick_tile(np_, (256, 128))
    nk = kp // tk
    multi_k = nk > 1

    a_p = _pad2d(a.astype(jnp.bfloat16), mp, kp)
    w_p = _pad2d(w.astype(jnp.bfloat16), kp, np_)
    s_p = _pad2d(scale.reshape(1, n).astype(jnp.float32), 1, np_)
    b_p = _pad2d(shift.reshape(1, n).astype(jnp.float32), 1, np_)

    inputs = [a_p, w_p, s_p, b_p]
    in_specs = [
        pl.BlockSpec((tm, tk), lambda i, j, kk: (i, kk)),
        pl.BlockSpec((tk, tn), lambda i, j, kk: (kk, j)),
        pl.BlockSpec((1, tn), lambda i, j, kk: (0, j)),
        pl.BlockSpec((1, tn), lambda i, j, kk: (0, j)),
    ]
    has_res = residual is not None
    if has_res:
        inputs.append(_pad2d(residual.astype(jnp.bfloat16), mp, np_))
        in_specs.append(pl.BlockSpec((tm, tn), lambda i, j, kk: (i, j)))

    scratch_shapes = [pltpu.VMEM((tm, tn), jnp.float32)] if multi_k else []

    out = pl.pallas_call(
        functools.partial(_mm_affine_kernel, relu=relu, has_res=has_res,
                          multi_k=multi_k),
        out_shape=jax.ShapeDtypeStruct((mp, np_), out_dtype),
        grid_spec=pltpu.PrefetchScalarGridSpec(
            num_scalar_prefetch=0,
            grid=(mp // tm, np_ // tn, nk),
            in_specs=in_specs,
            out_specs=pl.BlockSpec((tm, tn), lambda i, j, kk: (i, j)),
            scratch_shapes=scratch_shapes,
        ),
        compiler_params=pltpu.CompilerParams(
            dimension_semantics=("parallel", "parallel", "arbitrary"),
            vmem_limit_bytes=_VMEM_LIMIT,
        ),
    )(*inputs)
    return out[:m, :n]


# --------------------------------------------------------------------------- #
# Pallas kernel 2: direct 3x3 / stride-1 conv + BN (+ReLU), no HBM im2col
# --------------------------------------------------------------------------- #
def _conv3x3_kernel(x_ref, w_ref, s_ref, b_ref, o_ref, *,
                    oh, owp, cin, tco, relu):
    # x_ref: (1, OH+2, OWp+2, Cin) zero-padded image; w_ref: (9*Cin, TCO)
    # s_ref/b_ref: (1, TCO); o_ref: (1, OH, OWp, TCO)
    acc = jnp.zeros((oh * owp, tco), jnp.float32)      # stays in vregs (small)
    for di in range(3):
        for dj in range(3):
            xt = x_ref[0, di:di + oh, dj:dj + owp, :]        # (OH, OWp, Cin)
            xt = xt.reshape(oh * owp, cin)                   # OWp % 8 == 0
            wt = w_ref[(di * 3 + dj) * cin:(di * 3 + dj + 1) * cin, :]
            acc = acc + jnp.dot(xt, wt, preferred_element_type=jnp.float32)
    y = acc * s_ref[...] + b_ref[...]
    if relu:
        y = jnp.maximum(y, 0.0)
    o_ref[0] = y.reshape(oh, owp, tco).astype(o_ref.dtype)


def conv3x3_s1(x, w, scale, shift, *, relu):
    n, h, wd, cin = x.shape
    cout = w.shape[3]
    oh, ow = h, wd
    owp = _round_up(ow, 8)            # lane/sublane-friendly width; extras dropped
    hp, wpp = h + 2, owp + 2
    xp = jnp.pad(x.astype(jnp.bfloat16),
                 ((0, 0), (1, 1), (1, wpp - wd - 1), (0, 0)))
    wt = w.astype(jnp.bfloat16).reshape(9 * cin, cout)
    s2 = scale.reshape(1, cout).astype(jnp.float32)
    b2 = shift.reshape(1, cout).astype(jnp.float32)
    tco = min(256, cout)

    out = pl.pallas_call(
        functools.partial(_conv3x3_kernel, oh=oh, owp=owp, cin=cin, tco=tco,
                          relu=relu),
        out_shape=jax.ShapeDtypeStruct((n, oh, owp, cout), jnp.bfloat16),
        grid_spec=pltpu.PrefetchScalarGridSpec(
            num_scalar_prefetch=0,
            grid=(n, cout // tco),
            in_specs=[
                pl.BlockSpec((1, hp, wpp, cin), lambda ni, j: (ni, 0, 0, 0)),
                pl.BlockSpec((9 * cin, tco), lambda ni, j: (0, j)),
                pl.BlockSpec((1, tco), lambda ni, j: (0, j)),
                pl.BlockSpec((1, tco), lambda ni, j: (0, j)),
            ],
            out_specs=pl.BlockSpec((1, oh, owp, tco), lambda ni, j: (ni, 0, 0, j)),
        ),
        compiler_params=pltpu.CompilerParams(
            dimension_semantics=("parallel", "parallel"),
            vmem_limit_bytes=_VMEM_LIMIT,
        ),
    )(xp, wt, s2, b2)
    return out[:, :, :ow, :]


# --------------------------------------------------------------------------- #
# Pallas kernel 3: 3x3 / stride-2 maxpool over 4 parity quadrants
# --------------------------------------------------------------------------- #
def _maxpool_kernel(q00_ref, q01_ref, q10_ref, q11_ref, o_ref, *, oh, ow):
    quads = ((q00_ref, q01_ref), (q10_ref, q11_ref))
    r = None
    for di in range(3):
        for dj in range(3):
            q = quads[di % 2][dj % 2]
            t = q[0, di // 2:di // 2 + oh, dj // 2:dj // 2 + ow, :]
            r = t if r is None else jnp.maximum(r, t)
    o_ref[0] = r


def maxpool_3x3_s2_p1(x):
    n, h, wd, c = x.shape
    oh = (h + 2 - 3) // 2 + 1
    ow = (wd + 2 - 3) // 2 + 1
    hp, wp = 2 * (oh + 1), 2 * (ow + 1)
    neg = jnp.asarray(-jnp.inf, dtype=x.dtype)
    xp = jnp.pad(x, ((0, 0), (1, hp - h - 1), (1, wp - wd - 1), (0, 0)),
                 constant_values=neg)
    # 4 parity quadrants: same total bytes as the padded input (no 9x patches).
    quads = [xp[:, a::2, b::2, :] for a in (0, 1) for b in (0, 1)]
    return pl.pallas_call(
        functools.partial(_maxpool_kernel, oh=oh, ow=ow),
        out_shape=jax.ShapeDtypeStruct((n, oh, ow, c), x.dtype),
        grid_spec=pltpu.PrefetchScalarGridSpec(
            num_scalar_prefetch=0,
            grid=(n,),
            in_specs=[pl.BlockSpec((1, oh + 1, ow + 1, c),
                                   lambda ni: (ni, 0, 0, 0))] * 4,
            out_specs=pl.BlockSpec((1, oh, ow, c), lambda ni: (ni, 0, 0, 0)),
        ),
        compiler_params=pltpu.CompilerParams(
            dimension_semantics=("parallel",),
            vmem_limit_bytes=_VMEM_LIMIT,
        ),
    )(*quads)


# --------------------------------------------------------------------------- #
# Pallas kernel 4: global average pool
# --------------------------------------------------------------------------- #
def _gap_kernel(x_ref, o_ref):
    o_ref[...] = jnp.mean(x_ref[...].astype(jnp.float32), axis=1, keepdims=True)


def global_avgpool(x):
    n, h, wd, c = x.shape
    xr = x.reshape(n, h * wd, c)
    out = pl.pallas_call(
        _gap_kernel,
        out_shape=jax.ShapeDtypeStruct((n, 1, c), jnp.float32),
        grid_spec=pltpu.PrefetchScalarGridSpec(
            num_scalar_prefetch=0,
            grid=(n,),
            in_specs=[pl.BlockSpec((1, h * wd, c), lambda i: (i, 0, 0))],
            out_specs=pl.BlockSpec((1, 1, c), lambda i: (i, 0, 0)),
        ),
        compiler_params=pltpu.CompilerParams(
            dimension_semantics=("parallel",),
            vmem_limit_bytes=_VMEM_LIMIT,
        ),
    )(xr)
    return out.reshape(n, c)                 # == squeeze(-1).squeeze(-1)


# --------------------------------------------------------------------------- #
# conv dispatch (JAX glue around the kernels)
# --------------------------------------------------------------------------- #
def _im2col(x, kh, kw, stride, pad):
    n, h, wd, c = x.shape
    xp = jnp.pad(x, ((0, 0), (pad, pad), (pad, pad), (0, 0)))
    oh = (h + 2 * pad - kh) // stride + 1
    ow = (wd + 2 * pad - kw) // stride + 1
    cols = []
    for i in range(kh):
        for j in range(kw):
            cols.append(xp[:, i:i + stride * oh:stride, j:j + stride * ow:stride, :])
    patches = jnp.stack(cols, axis=-2).reshape(n * oh * ow, kh * kw * c)
    return patches, (n, oh, ow)


def conv_im2col(x, w, scale, shift, *, stride, pad, relu):
    # TODO(synk): only the 7x7 stem and the three stride-2 3x3 convs still use an
    # HBM-materialized im2col; a strided direct-conv kernel would remove that too.
    kh, kw, cin, cout = w.shape
    patches, (n, oh, ow) = _im2col(x.astype(jnp.bfloat16), kh, kw, stride, pad)
    y = matmul_affine(patches, w.reshape(kh * kw * cin, cout), scale, shift,
                      relu=relu)
    return y.reshape(n, oh, ow, cout)


def conv1x1(x, w, scale, shift, *, stride=1, relu, residual=None):
    if stride > 1:
        x = x[:, ::stride, ::stride, :]
    n, h, wd, cin = x.shape
    cout = w.shape[3]
    res = residual.reshape(n * h * wd, cout) if residual is not None else None
    y = matmul_affine(x.reshape(n * h * wd, cin), w.reshape(cin, cout),
                      scale, shift, relu=relu, residual=res)
    return y.reshape(n, h, wd, cout)


def conv3x3(x, w, scale, shift, *, stride, relu):
    if stride == 1:
        return conv3x3_s1(x, w, scale, shift, relu=relu)
    return conv_im2col(x, w, scale, shift, stride=stride, pad=1, relu=relu)


# --------------------------------------------------------------------------- #
# jitted network pieces (identical-shape blocks reuse one executable)
# --------------------------------------------------------------------------- #
@jax.jit
def _stem(x_nchw, conv1_w, bn1):
    x = jnp.transpose(x_nchw, (0, 2, 3, 1)).astype(jnp.bfloat16)   # NCHW -> NHWC
    x = conv_im2col(x, conv1_w, bn1[0], bn1[1], stride=2, pad=3, relu=True)
    return maxpool_3x3_s2_p1(x)


@functools.partial(jax.jit, static_argnames=("stride",))
def _bottleneck_block(x, blk, stride):
    identity = x
    out = conv1x1(x, blk["conv1_w"], *blk["bn1"], relu=True)
    out = conv3x3(out, blk["conv2_w"], *blk["bn2"], stride=stride, relu=True)
    if "down_w" in blk:
        identity = conv1x1(x, blk["down_w"], *blk["down_bn"], stride=stride,
                           relu=False)
    # conv3 + BN + residual add + ReLU fused into one matmul epilogue.
    return conv1x1(out, blk["conv3_w"], *blk["bn3"], relu=True,
                   residual=identity)


@jax.jit
def _head(x, fc_w, fc_b):
    feat = global_avgpool(x)                                   # (N, 2048)
    nc = fc_w.shape[1]
    return matmul_affine(feat, fc_w, jnp.ones((nc,), jnp.float32), fc_b,
                         relu=False, out_dtype=jnp.float32)


# --------------------------------------------------------------------------- #
# Deterministic synthetic ResNet-101 + new fc head ("WoofNet")
# --------------------------------------------------------------------------- #
_BLOCKS_PER_LAYER = (3, 4, 23, 3)     # resnet101
_PLANES_PER_LAYER = (64, 128, 256, 512)
_EXPANSION = 4


def _conv_w(key, kh, kw, cin, cout):
    std = (2.0 / (kh * kw * cin)) ** 0.5
    return (std * jax.random.normal(key, (kh, kw, cin, cout), jnp.float32)
            ).astype(jnp.bfloat16)


def _bn_affine(key, c, eps=1e-5):
    # Eval-mode BatchNorm folded to per-channel scale/shift (kept in f32).
    # TODO(synk): train-mode BN (batch statistics) is not implemented.
    k1, k2 = jax.random.split(key)
    gamma = jax.random.uniform(k1, (c,), jnp.float32, 0.5, 1.5)
    beta = 0.1 * jax.random.normal(k2, (c,), jnp.float32)
    running_mean = jnp.zeros((c,), jnp.float32)
    running_var = jnp.ones((c,), jnp.float32)
    scale = gamma / jnp.sqrt(running_var + eps)
    shift = beta - running_mean * scale
    return scale, shift


def init_woofnet_params(key, n_classes):
    # TODO(synk): the original module loads torchvision's pretrained ResNet-101;
    # weights here are synthetic and deterministic.
    keys = iter(jax.random.split(key, 512))
    nk = lambda: next(keys)
    params = {
        "conv1_w": _conv_w(nk(), 7, 7, 3, 64),
        "bn1": _bn_affine(nk(), 64),
        "layers": [],
    }
    inplanes = 64
    for nblocks, planes in zip(_BLOCKS_PER_LAYER, _PLANES_PER_LAYER):
        blocks = []
        for bi in range(nblocks):
            blk = {
                "conv1_w": _conv_w(nk(), 1, 1, inplanes, planes),
                "bn1": _bn_affine(nk(), planes),
                "conv2_w": _conv_w(nk(), 3, 3, planes, planes),
                "bn2": _bn_affine(nk(), planes),
                "conv3_w": _conv_w(nk(), 1, 1, planes, planes * _EXPANSION),
                "bn3": _bn_affine(nk(), planes * _EXPANSION),
            }
            if bi == 0:
                blk["down_w"] = _conv_w(nk(), 1, 1, inplanes, planes * _EXPANSION)
                blk["down_bn"] = _bn_affine(nk(), planes * _EXPANSION)
            blocks.append(blk)
            inplanes = planes * _EXPANSION
        params["layers"].append(blocks)
    feat_dim = _PLANES_PER_LAYER[-1] * _EXPANSION  # 2048 (= backbone[-1].in_features)
    kw_, kb_ = jax.random.split(nk())
    bound = 1.0 / (feat_dim ** 0.5)
    params["fc_w"] = jax.random.uniform(
        kw_, (feat_dim, n_classes), jnp.float32, -bound, bound
    ).astype(jnp.bfloat16)
    params["fc_b"] = jax.random.uniform(kb_, (n_classes,), jnp.float32,
                                        -bound, bound)
    return params


def woofnet_forward(params, x_nchw):
    """x_nchw: (N, 3, H, W) float32, same convention as the PyTorch module."""
    x = _stem(x_nchw.astype(jnp.float32), params["conv1_w"], params["bn1"])
    for li, blocks in enumerate(params["layers"]):
        for bi, blk in enumerate(blocks):
            stride = (1 if li == 0 else 2) if bi == 0 else 1
            x = _bottleneck_block(x, blk, stride=stride)
    return _head(x, params["fc_w"], params["fc_b"])


# --------------------------------------------------------------------------- #
if __name__ == "__main__":
    key = jax.random.PRNGKey(0)
    pkey, xkey = jax.random.split(key)

    n_classes = 10                       # ImageWoof has 10 classes
    params = init_woofnet_params(pkey, n_classes)

    # Small NCHW input consistent with the module (/32 downsampling leaves a
    # 1x1 map before the global pool).
    x = jax.random.normal(xkey, (2, 3, 32, 32), jnp.float32)

    logits = woofnet_forward(params, x)
    logits = jax.block_until_ready(logits)

    assert logits.shape == (2, n_classes), logits.shape
    assert bool(jnp.all(jnp.isfinite(logits)))
    print("KERNEL_OK")
</pallas_src>

<mosaic_0001>
module attributes {stable_mosaic.version = 11 : i64} {
  func.func @_mm_affine_kernel(%arg0: i32, %arg1: i32, %arg2: i32, %arg3: memref<512x256xbf16, #tpu.memory_space<vmem>>, %arg4: memref<256x128xbf16, #tpu.memory_space<vmem>>, %arg5: memref<1x128xf32, #tpu.memory_space<vmem>>, %arg6: memref<1x128xf32, #tpu.memory_space<vmem>>, %arg7: memref<512x128xbf16, #tpu.memory_space<vmem>>) attributes {dimension_semantics = [#tpu.dimension_semantics<parallel>, #tpu.dimension_semantics<parallel>, #tpu.dimension_semantics<arbitrary>], iteration_bounds = array<i64: 1, 1, 1>, scalar_prefetch = 0 : i64, scratch_operands = 0 : i64, tpu.core_type = #tpu.core_type<tc>, window_params = [{transform_indices = @transform_0, window_bounds = array<i64: 512, 256>}, {transform_indices = @transform_1, window_bounds = array<i64: 256, 128>}, {transform_indices = @transform_2, window_bounds = array<i64: 1, 128>}, {transform_indices = @transform_3, window_bounds = array<i64: 1, 128>}, {transform_indices = @transform_4, window_bounds = array<i64: 512, 128>}]} {
    %c0 = arith.constant 0 : index
    %c0_0 = arith.constant 0 : index
    %0 = vector.load %arg3[%c0, %c0_0] : memref<512x256xbf16, #tpu.memory_space<vmem>>, vector<512x256xbf16>
    %c0_1 = arith.constant 0 : index
    %c0_2 = arith.constant 0 : index
    %1 = vector.load %arg4[%c0_1, %c0_2] : memref<256x128xbf16, #tpu.memory_space<vmem>>, vector<256x128xbf16>
    %cst = arith.constant dense<0.000000e+00> : vector<512x128xf32>
    %2 = tpu.matmul %0, %1, %cst {dimension_numbers = #tpu.dot_dimension_numbers<[1], [0], [0], [1], [0, 0, 1, 1], [], []>} : vector<512x256xbf16>, vector<256x128xbf16>, vector<512x128xf32> -> vector<512x128xf32>
    %c0_3 = arith.constant 0 : index
    %c0_4 = arith.constant 0 : index
    %3 = vector.load %arg5[%c0_3, %c0_4] : memref<1x128xf32, #tpu.memory_space<vmem>>, vector<1x128xf32>
    %4 = vector.broadcast %3 : vector<1x128xf32> to vector<512x128xf32>
    %5 = arith.mulf %2, %4 : vector<512x128xf32>
    %c0_5 = arith.constant 0 : index
    %c0_6 = arith.constant 0 : index
    %6 = vector.load %arg6[%c0_5, %c0_6] : memref<1x128xf32, #tpu.memory_space<vmem>>, vector<1x128xf32>
    %7 = vector.broadcast %6 : vector<1x128xf32> to vector<512x128xf32>
    %8 = arith.addf %5, %7 : vector<512x128xf32>
    %cst_7 = arith.constant 0.000000e+00 : f32
    %9 = vector.broadcast %cst_7 : f32 to vector<512x128xf32>
    %10 = arith.maximumf %8, %9 : vector<512x128xf32>
    %11 = arith.truncf %10 : vector<512x128xf32> to vector<512x128xbf16>
    %c0_8 = arith.constant 0 : index
    %c0_9 = arith.constant 0 : index
    %12 = vector.load %arg7[%c0_8, %c0_9] : memref<512x128xbf16, #tpu.memory_space<vmem>>, vector<512x128xbf16>
    tpu.vector_store %arg7[%c0_8, %c0_9], %11 {strides = array<i32>} : memref<512x128xbf16, #tpu.memory_space<vmem>>, vector<512x128xbf16>,
    return
  }
  func.func @transform_0(%arg0: i32, %arg1: i32, %arg2: i32) -> (i32, i32) {
    %c0_i32 = arith.constant 0 : i32
    return %arg0, %arg2 : i32, i32
  }
  func.func @transform_1(%arg0: i32, %arg1: i32, %arg2: i32) -> (i32, i32) {
    %c0_i32 = arith.constant 0 : i32
    return %arg2, %arg1 : i32, i32
  }
  func.func @transform_2(%arg0: i32, %arg1: i32, %arg2: i32) -> (i32, i32) {
    %c0_i32 = arith.constant 0 : i32
    %c0_i32_0 = arith.constant 0 : i32
    return %c0_i32, %arg1 : i32, i32
  }
  func.func @transform_3(%arg0: i32, %arg1: i32, %arg2: i32) -> (i32, i32) {
    %c0_i32 = arith.constant 0 : i32
    %c0_i32_0 = arith.constant 0 : i32
    return %c0_i32, %arg1 : i32, i32
  }
  func.func @transform_4(%arg0: i32, %arg1: i32, %arg2: i32) -> (i32, i32) {
    %c0_i32 = arith.constant 0 : i32
    return %arg0, %arg1 : i32, i32
  }
}

module attributes {stable_mosaic.version = 11 : i64} {
  func.func @_maxpool_kernel(%arg0: i32, %arg1: memref<1x9x9x64xbf16, #tpu.memory_space<vmem>>, %arg2: memref<1x9x9x64xbf16, #tpu.memory_space<vmem>>, %arg3: memref<1x9x9x64xbf16, #tpu.memory_space<vmem>>, %arg4: memref<1x9x9x64xbf16, #tpu.memory_space<vmem>>, %arg5: memref<1x8x8x64xbf16, #tpu.memory_space<vmem>>) attributes {dimension_semantics = [#tpu.dimension_semantics<parallel>], iteration_bounds = array<i64: 2>, scalar_prefetch = 0 : i64, scratch_operands = 0 : i64, tpu.core_type = #tpu.core_type<tc>, window_params = [{transform_indices = @transform_0, window_bounds = array<i64: 1, 9, 9, 64>}, {transform_indices = @transform_1, window_bounds = array<i64: 1, 9, 9, 64>}, {transform_indices = @transform_2, window_bounds = array<i64: 1, 9, 9, 64>}, {transform_indices = @transform_3, window_bounds = array<i64: 1, 9, 9, 64>}, {transform_indices = @transform_4, window_bounds = array<i64: 1, 8, 8, 64>}]} {
    %c0 = arith.constant 0 : index
    %c0_0 = arith.constant 0 : index
    %c0_1 = arith.constant 0 : index
    %c0_2 = arith.constant 0 : index
    %0 = vector.load %arg1[%c0, %c0_0, %c0_1, %c0_2] : memref<1x9x9x64xbf16, #tpu.memory_space<vmem>>, vector<1x8x8x64xbf16>
    %1 = vector.shape_cast %0 : vector<1x8x8x64xbf16> to vector<8x8x64xbf16>
    %c0_3 = arith.constant 0 : index
    %c0_4 = arith.constant 0 : index
    %c0_5 = arith.constant 0 : index
    %c0_6 = arith.constant 0 : index
    %2 = vector.load %arg2[%c0_3, %c0_4, %c0_5, %c0_6] : memref<1x9x9x64xbf16, #tpu.memory_space<vmem>>, vector<1x8x8x64xbf16>
    %3 = vector.shape_cast %2 : vector<1x8x8x64xbf16> to vector<8x8x64xbf16>
    %4 = arith.maximumf %1, %3 : vector<8x8x64xbf16>
    %c0_7 = arith.constant 0 : index
    %c0_8 = arith.constant 0 : index
    %c1 = arith.constant 1 : index
    %c0_9 = arith.constant 0 : index
    %5 = vector.load %arg1[%c0_7, %c0_8, %c1, %c0_9] : memref<1x9x9x64xbf16, #tpu.memory_space<vmem>>, vector<1x8x8x64xbf16>
    %6 = vector.shape_cast %5 : vector<1x8x8x64xbf16> to vector<8x8x64xbf16>
    %7 = arith.maximumf %4, %6 : vector<8x8x64xbf16>
    %c0_10 = arith.constant 0 : index
    %c0_11 = arith.constant 0 : index
    %c0_12 = arith.constant 0 : index
    %c0_13 = arith.constant 0 : index
    %8 = vector.load %arg3[%c0_10, %c0_11, %c0_12, %c0_13] : memref<1x9x9x64xbf16, #tpu.memory_space<vmem>>, vector<1x8x8x64xbf16>
    %9 = vector.shape_cast %8 : vector<1x8x8x64xbf16> to vector<8x8x64xbf16>
    %10 = arith.maximumf %7, %9 : vector<8x8x64xbf16>
    %c0_14 = arith.constant 0 : index
    %c0_15 = arith.constant 0 : index
    %c0_16 = arith.constant 0 : index
    %c0_17 = arith.constant 0 : index
    %11 = vector.load %arg4[%c0_14, %c0_15, %c0_16, %c0_17] : memref<1x9x9x64xbf16, #tpu.memory_space<vmem>>, vector<1x8x8x64xbf16>
    %12 = vector.shape_cast %11 : vector<1x8x8x64xbf16> to vector<8x8x64xbf16>
    %13 = arith.maximumf %10, %12 : vector<8x8x64xbf16>
    %c0_18 = arith.constant 0 : index
    %c0_19 = arith.constant 0 : index
    %c1_20 = arith.constant 1 : index
    %c0_21 = arith.constant 0 : index
    %14 = vector.load %arg3[%c0_18, %c0_19, %c1_20, %c0_21] : memref<1x9x9x64xbf16, #tpu.memory_space<vmem>>, vector<1x8x8x64xbf16>
    %15 = vector.shape_cast %14 : vector<1x8x8x64xbf16> to vector<8x8x64xbf16>
    %16 = arith.maximumf %13, %15 : vector<8x8x64xbf16>
    %c0_22 = arith.constant 0 : index
    %c1_23 = arith.constant 1 : index
    %c0_24 = arith.constant 0 : index
    %c0_25 = arith.constant 0 : index
    %17 = vector.load %arg1[%c0_22, %c1_23, %c0_24, %c0_25] : memref<1x9x9x64xbf16, #tpu.memory_space<vmem>>, vector<1x8x8x64xbf16>
    %18 = vector.shape_cast %17 : vector<1x8x8x64xbf16> to vector<8x8x64xbf16>
    %19 = arith.maximumf %16, %18 : vector<8x8x64xbf16>
    %c0_26 = arith.constant 0 : index
    %c1_27 = arith.constant 1 : index
    %c0_28 = arith.constant 0 : index
    %c0_29 = arith.constant 0 : index
    %20 = vector.load %arg2[%c0_26, %c1_27, %c0_28, %c0_29] : memref<1x9x9x64xbf16, #tpu.memory_space<vmem>>, vector<1x8x8x64xbf16>
    %21 = vector.shape_cast %20 : vector<1x8x8x64xbf16> to vector<8x8x64xbf16>
    %22 = arith.maximumf %19, %21 : vector<8x8x64xbf16>
    %c0_30 = arith.constant 0 : index
    %c1_31 = arith.constant 1 : index
    %c1_32 = arith.constant 1 : index
    %c0_33 = arith.constant 0 : index
    %23 = vector.load %arg1[%c0_30, %c1_31, %c1_32, %c0_33] : memref<1x9x9x64xbf16, #tpu.memory_space<vmem>>, vector<1x8x8x64xbf16>
    %24 = vector.shape_cast %23 : vector<1x8x8x64xbf16> to vector<8x8x64xbf16>
    %25 = arith.maximumf %22, %24 : vector<8x8x64xbf16>
    %c0_34 = arith.constant 0 : index
    %c0_35 = arith.constant 0 : index
    %c0_36 = arith.constant 0 : index
    %c0_37 = arith.constant 0 : index
    %26 = vector.load %arg5[%c0_34, %c0_35, %c0_36, %c0_37] : memref<1x8x8x64xbf16, #tpu.memory_space<vmem>>, vector<1x8x8x64xbf16>
    %27 = vector.shape_cast %26 : vector<1x8x8x64xbf16> to vector<8x8x64xbf16>
    %28 = vector.shape_cast %25 : vector<8x8x64xbf16> to vector<1x8x8x64xbf16>
    tpu.vector_store %arg5[%c0_34, %c0_35, %c0_36, %c0_37], %28 {strides = array<i32>} : memref<1x8x8x64xbf16, #tpu.memory_space<vmem>>, vector<1x8x8x64xbf16>,
    return
  }
  func.func @transform_0(%arg0: i32) -> (i32, i32, i32, i32) {
    %c0_i32 = arith.constant 0 : i32
    %c0_i32_0 = arith.constant 0 : i32
    %c0_i32_1 = arith.constant 0 : i32
    %c0_i32_2 = arith.constant 0 : i32
    return %arg0, %c0_i32, %c0_i32_0, %c0_i32_1 : i32, i32, i32, i32
  }
  func.func @transform_1(%arg0: i32) -> (i32, i32, i32, i32) {
    %c0_i32 = arith.constant 0 : i32
    %c0_i32_0 = arith.constant 0 : i32
    %c0_i32_1 = arith.constant 0 : i32
    %c0_i32_2 = arith.constant 0 : i32
    return %arg0, %c0_i32, %c0_i32_0, %c0_i32_1 : i32, i32, i32, i32
  }
  func.func @transform_2(%arg0: i32) -> (i32, i32, i32, i32) {
    %c0_i32 = arith.constant 0 : i32
    %c0_i32_0 = arith.constant 0 : i32
    %c0_i32_1 = arith.constant 0 : i32
    %c0_i32_2 = arith.constant 0 : i32
    return %arg0, %c0_i32, %c0_i32_0, %c0_i32_1 : i32, i32, i32, i32
  }
  func.func @transform_3(%arg0: i32) -> (i32, i32, i32, i32) {
    %c0_i32 = arith.constant 0 : i32
    %c0_i32_0 = arith.constant 0 : i32
    %c0_i32_1 = arith.constant 0 : i32
    %c0_i32_2 = arith.constant 0 : i32
    return %arg0, %c0_i32, %c0_i32_0, %c0_i32_1 : i32, i32, i32, i32
  }
  func.func @transform_4(%arg0: i32) -> (i32, i32, i32, i32) {
    %c0_i32 = arith.constant 0 : i32
    %c0_i32_0 = arith.constant 0 : i32
    %c0_i32_1 = arith.constant 0 : i32
    %c0_i32_2 = arith.constant 0 : i32
    return %arg0, %c0_i32, %c0_i32_0, %c0_i32_1 : i32, i32, i32, i32
  }
}

</mosaic_0001>

<llo_original>
// kernel: _stem.3
$region0: #{_stem.3}
  #allocation0 [shape = 'u32[]', space=smem, size = 0x4, offset = 0x4, fixed_abs, tag = 'smem constant byte address 0x4 - core index']
  #allocation1 [shape = 'u32[72,128]{1,0:T(1,128)}', space=vmem, size = 0x9000, scoped, tag = 'internal scratch']
  %s0 = inlined_call_operand.vmem [shape: bf16[2,9,9,64], index: 0, kind: input, shape index: {}]
  %s1 = inlined_call_operand.vmem [shape: bf16[2,9,9,64], index: 1, kind: input, shape index: {}]
  %s2 = inlined_call_operand.vmem [shape: bf16[2,9,9,64], index: 2, kind: input, shape index: {}]
  %s3 = inlined_call_operand.vmem [shape: bf16[2,9,9,64], index: 3, kind: input, shape index: {}]
  %s4 = inlined_call_operand.hbm [shape: bf16[2,8,8,64], index: 4, kind: output, shape index: {}]
  %s5 = sld [smem:[#allocation0]]
  $region49: #{_stem.3} parent=0
    _
  %s7 = ssub.s32 1, %s5
  %s8 = scalar_select 0, %s7, %s5
  $region1: #{_stem.3} parent=0
    #allocation2 [shape = 'u8[32768]{0}', space=vmem, size = 0x8000, scoped, tag = 'output window, operand 0']
    #allocation3 [shape = 's32[2]{0}', space=sflag, size = 0x8, scoped, tag = 'scoped memory for _stem.3']
    %9 = vsyncpa [#allocation3], 0
    %s10 = scalar_lea.sflag [#allocation3], 1
    %11 = vsyncpa %s10, 0
    loop: start=0, step=1, limit=4
    $region2: #{_stem.3} parent=1 // loop_pre_header
      _
    $region3: #{_stem.3} parent=1 // loop_header
      %s13 = sphi 0, %s17
      %p14 = scmp.ge.s32.totalorder %s13, 4
      %s23 = sphi 0, %s25
      %s26 = sphi 0, %s23
      %s27 = sphi 0, %s26
      %s43 = sphi 0, %s27
      %s49 = sphi 0, %s51
      %s52 = sphi 0, %s49
      %s53 = sphi 0, %s52
      %s69 = sphi 0, %s53
      %s75 = sphi 0, %s77
      %s78 = sphi 0, %s75
      %s79 = sphi 0, %s78
      %s95 = sphi 0, %s79
      %s101 = sphi 0, %s103
      %s104 = sphi 0, %s101
      %s105 = sphi 0, %s104
      %s121 = sphi 0, %s105
      %s127 = sphi 0, %s129
      %s130 = sphi 0, %s127
      %s131 = sphi 0, %s130
      %s147 = sphi 0, %s131
    $region4: #{_stem.3} parent=1 // loop_header_branch
      %16 = sbr.rel (%p14) target = $region8
    $region5: #{_stem.3} parent=1 // loop_body
      %s18 = ssub.s32 %s13, 1
      %s19 = ssub.s32 %s13, 2
      %s20 = sadd.s32 %s13, 1
      %s21 = ssub.s32 %s13, %s20
      %p22 = scmp.eq.s32.totalorder %s21, 0
      %s24 = sadd.s32 %s23, 1
      %s25 = scalar_select %p22, %s23, %s24
      %p28 = pneg %p22
      %p29 = scmp.eq.s32.totalorder %s13, 1
      %p30 = por %p28, %p29
      %p31 = scmp.ne.s32.totalorder %s23, %s26
      %p32 = scmp.eq.s32.totalorder %s13, 0
      %p33 = por %p31, %p32
      %p34 = scmp.ne.s32.totalorder %s23, %s26
      %p35 = scmp.eq.s32.totalorder %s18, 1
      %p36 = por %p34, %p35
      %p37 = scmp.ne.s32.totalorder %s26, %s27
      %p38 = scmp.eq.s32.totalorder %s18, 0
      %p39 = por %p37, %p38
      %p40 = scmp.ne.s32.totalorder %s26, %s27
      %p41 = scmp.eq.s32.totalorder %s19, 1
      %p42 = por %p40, %p41
      %p44 = scmp.ne.s32.totalorder %s27, %s43
      %p45 = scmp.eq.s32.totalorder %s19, 0
      %p46 = por %p44, %p45
      %s47 = ssub.s32 %s13, %s20
      %p48 = scmp.eq.s32.totalorder %s47, 0
      %s50 = sadd.s32 %s49, 1
      %s51 = scalar_select %p48, %s49, %s50
      %p54 = pneg %p48
      %p55 = scmp.eq.s32.totalorder %s13, 1
      %p56 = por %p54, %p55
      %p57 = scmp.ne.s32.totalorder %s49, %s52
      %p58 = scmp.eq.s32.totalorder %s13, 0
      %p59 = por %p57, %p58
      %p60 = scmp.ne.s32.totalorder %s49, %s52
      %p61 = scmp.eq.s32.totalorder %s18, 1
      %p62 = por %p60, %p61
      %p63 = scmp.ne.s32.totalorder %s52, %s53
      %p64 = scmp.eq.s32.totalorder %s18, 0
      %p65 = por %p63, %p64
      %p66 = scmp.ne.s32.totalorder %s52, %s53
      %p67 = scmp.eq.s32.totalorder %s19, 1
      %p68 = por %p66, %p67
      %p70 = scmp.ne.s32.totalorder %s53, %s69
      %p71 = scmp.eq.s32.totalorder %s19, 0
      %p72 = por %p70, %p71
      %s73 = ssub.s32 %s13, %s20
      %p74 = scmp.eq.s32.totalorder %s73, 0
      %s76 = sadd.s32 %s75, 1
      %s77 = scalar_select %p74, %s75, %s76
      %p80 = pneg %p74
      %p81 = scmp.eq.s32.totalorder %s13, 1
      %p82 = por %p80, %p81
      %p83 = scmp.ne.s32.totalorder %s75, %s78
      %p84 = scmp.eq.s32.totalorder %s13, 0
      %p85 = por %p83, %p84
      %p86 = scmp.ne.s32.totalorder %s75, %s78
      %p87 = scmp.eq.s32.totalorder %s18, 1
      %p88 = por %p86, %p87
      %p89 = scmp.ne.s32.totalorder %s78, %s79
      %p90 = scmp.eq.s32.totalorder %s18, 0
      %p91 = por %p89, %p90
      %p92 = scmp.ne.s32.totalorder %s78, %s79
      %p93 = scmp.eq.s32.totalorder %s19, 1
      %p94 = por %p92, %p93
      %p96 = scmp.ne.s32.totalorder %s79, %s95
      %p97 = scmp.eq.s32.totalorder %s19, 0
      %p98 = por %p96, %p97
      %s99 = ssub.s32 %s13, %s20
      %p100 = scmp.eq.s32.totalorder %s99, 0
      %s102 = sadd.s32 %s101, 1
      %s103 = scalar_select %p100, %s101, %s102
      %p106 = pneg %p100
      %p107 = scmp.eq.s32.totalorder %s13, 1
      %p108 = por %p106, %p107
      %p109 = scmp.ne.s32.totalorder %s101, %s104
      %p110 = scmp.eq.s32.totalorder %s13, 0
      %p111 = por %p109, %p110
      %p112 = scmp.ne.s32.totalorder %s101, %s104
      %p113 = scmp.eq.s32.totalorder %s18, 1
      %p114 = por %p112, %p113
      %p115 = scmp.ne.s32.totalorder %s104, %s105
      %p116 = scmp.eq.s32.totalorder %s18, 0
      %p117 = por %p115, %p116
      %p118 = scmp.ne.s32.totalorder %s104, %s105
      %p119 = scmp.eq.s32.totalorder %s19, 1
      %p120 = por %p118, %p119
      %p122 = scmp.ne.s32.totalorder %s105, %s121
      %p123 = scmp.eq.s32.totalorder %s19, 0
      %p124 = por %p122, %p123
      %s125 = ssub.s32 %s13, %s20
      %p126 = scmp.eq.s32.totalorder %s125, 0
      %s128 = sadd.s32 %s127, 1
      %s129 = scalar_select %p126, %s127, %s128
      %p132 = pneg %p126
      %p133 = scmp.eq.s32.totalorder %s13, 1
      %p134 = por %p132, %p133
      %p135 = scmp.ne.s32.totalorder %s127, %s130
      %p136 = scmp.eq.s32.totalorder %s13, 0
      %p137 = por %p135, %p136
      %p138 = scmp.ne.s32.totalorder %s127, %s130
      %p139 = scmp.eq.s32.totalorder %s18, 1
      %p140 = por %p138, %p139
      %p141 = scmp.ne.s32.totalorder %s130, %s131
      %p142 = scmp.eq.s32.totalorder %s18, 0
      %p143 = por %p141, %p142
      %p144 = scmp.ne.s32.totalorder %s130, %s131
      %p145 = scmp.eq.s32.totalorder %s19, 1
      %p146 = por %p144, %p145
      %p148 = scmp.ne.s32.totalorder %s131, %s147
      %p149 = scmp.eq.s32.totalorder %s19, 0
      %p150 = por %p148, %p149
      %p151 = scmp.le.s32.totalorder 1, %s13
      %p152 = scmp.lt.s32.totalorder %s13, 3
      %p153 = pnand %p151, %p152
      %p154 = pneg %p153
      // Predicated region
      $region9: #{_stem.3} parent=5 // pred_check
        _
      $region10: #{_stem.3} parent=5 // pred_check_branch
        %156 = sbr.rel (%p153) target = $region12
      $region11: #{_stem.3} parent=5 // pred_region
        %s157 = ssub.s32 %s13, 1
      $region12: #{_stem.3} parent=5 // pred_fallthru
        _
      %p158 = scmp.lt.s32.totalorder %s13, 2
      // Predicated region
      $region13: #{_stem.3} parent=5 // pred_check
        %p159 = pneg %p158
      $region14: #{_stem.3} parent=5 // pred_check_branch
        %161 = sbr.rel (%p159) target = $region16
      $region15: #{_stem.3} parent=5 // pred_region
        // Predicated region
        $region17: #{_stem.3} parent=15 // pred_check
          %p162 = pneg %p33
        $region18: #{_stem.3} parent=15 // pred_check_branch
          %164 = sbr.rel (%p162) target = $region20
        $region19: #{_stem.3} parent=15 // pred_region
          %p165 = scmp.lt.s32.totalorder %s13, 1
          %s166 = scalar_select %p165, %s13, 1
          %s167 = smul.addr %s166, 18
          %s168 = smul.addr %s167, 4
          %s169 = scalar_lea.vmem %s0, %s168
        $region20: #{_stem.3} parent=15 // pred_fallthru
          _
        // Predicated region
        $region21: #{_stem.3} parent=15 // pred_check
          %p170 = pneg %p59
        $region22: #{_stem.3} parent=15 // pred_check_branch
          %172 = sbr.rel (%p170) target = $region24
        $region23: #{_stem.3} parent=15 // pred_region
          %p173 = scmp.lt.s32.totalorder %s13, 1
          %s174 = scalar_select %p173, %s13, 1
          %s175 = smul.addr %s174, 18
          %s176 = smul.addr %s175, 4
          %s177 = scalar_lea.vmem %s1, %s176
        $region24: #{_stem.3} parent=15 // pred_fallthru
          _
        // Predicated region
        $region25: #{_stem.3} parent=15 // pred_check
          %p178 = pneg %p85
        $region26: #{_stem.3} parent=15 // pred_check_branch
          %180 = sbr.rel (%p178) target = $region28
        $region27: #{_stem.3} parent=15 // pred_region
          %p181 = scmp.lt.s32.totalorder %s13, 1
          %s182 = scalar_select %p181, %s13, 1
          %s183 = smul.addr %s182, 18
          %s184 = smul.addr %s183, 4
          %s185 = scalar_lea.vmem %s2, %s184
        $region28: #{_stem.3} parent=15 // pred_fallthru
          _
        // Predicated region
        $region29: #{_stem.3} parent=15 // pred_check
          %p186 = pneg %p111
        $region30: #{_stem.3} parent=15 // pred_check_branch
          %188 = sbr.rel (%p186) target = $region32
        $region31: #{_stem.3} parent=15 // pred_region
          %p189 = scmp.lt.s32.totalorder %s13, 1
          %s190 = scalar_select %p189, %s13, 1
          %s191 = smul.addr %s190, 18
          %s192 = smul.addr %s191, 4
          %s193 = scalar_lea.vmem %s3, %s192
        $region32: #{_stem.3} parent=15 // pred_fallthru
          _
      $region16: #{_stem.3} parent=5 // pred_fallthru
        _
      %p194 = scmp.le.s32.totalorder 1, %s13
      %p195 = scmp.lt.s32.totalorder %s13, 3
      %p196 = pnand %p194, %p195
      %p197 = pneg %p196
      // Predicated region
      $region33: #{_stem.3} parent=5 // pred_check
        _
      $region34: #{_stem.3} parent=5 // pred_check_branch
        %199 = sbr.rel (%p196) target = $region36
      $region35: #{_stem.3} parent=5 // pred_region
        %s200 = ssub.s32 %s13, 1
        %p201 = scmp.lt.s32.totalorder %s18, 1
        %s202 = scalar_select %p201, %s18, 1
        %s203 = smul.addr %s202, 18
        %s204 = smul.addr %s203, 4
        %s205 = scalar_lea.vmem %s0, %s204
        %p206 = pneg %p39
        %p207 = pneg %p36
        %p208 = scmp.lt.s32.totalorder %s18, 1
        %s209 = scalar_select %p208, %s18, 1
        %s210 = smul.addr %s209, 18
        %s211 = smul.addr %s210, 4
        %s212 = scalar_lea.vmem %s1, %s211
        %p213 = pneg %p65
        %p214 = pneg %p62
        %p215 = scmp.lt.s32.totalorder %s18, 1
        %s216 = scalar_select %p215, %s18, 1
        %s217 = smul.addr %s216, 18
        %s218 = smul.addr %s217, 4
        %s219 = scalar_lea.vmem %s2, %s218
        %p220 = pneg %p91
        %p221 = pneg %p88
        %p222 = scmp.lt.s32.totalorder %s18, 1
        %s223 = scalar_select %p222, %s18, 1
        %s224 = smul.addr %s223, 18
        %s225 = smul.addr %s224, 4
        %s226 = scalar_lea.vmem %s3, %s225
        %p227 = pneg %p117
        %p228 = pneg %p114
        %p229 = pneg %p143
        %p230 = pneg %p140
        %s231 = sand.u32 %s130, 1
        %s232 = scalar_lea.sflag [#allocation3], %s231
        %s233 = sand.u32 %s130, 1
        %s234 = smul.addr %s233, 32
        %s235 = scalar_lea.vmem [#allocation2], %s234
        %p236 = scmp.lt.s32.totalorder %s18, 1
        %s237 = scalar_select %p236, %s18, 1
        %s238 = smul.addr %s237, 18
        %s239 = smul.addr %s238, 4
        %s240 = scalar_lea.vmem %s0, %s239
        %p241 = scmp.lt.s32.totalorder %s18, 1
        %s242 = scalar_select %p241, %s18, 1
        %s243 = smul.addr %s242, 18
        %s244 = smul.addr %s243, 4
        %s245 = scalar_lea.vmem %s1, %s244
        %p246 = scmp.lt.s32.totalorder %s18, 1
        %s247 = scalar_select %p246, %s18, 1
        %s248 = smul.addr %s247, 18
        %s249 = smul.addr %s248, 4
        %s250 = scalar_lea.vmem %s2, %s249
        %p251 = scmp.lt.s32.totalorder %s18, 1
        %s252 = scalar_select %p251, %s18, 1
        %s253 = smul.addr %s252, 18
        %s254 = smul.addr %s253, 4
        %s255 = scalar_lea.vmem %s3, %s254
        %v256 = vld [vmem:[%s240] sm:$0xf]
        %v257 = vld [vmem:[%s240 + $0x8] sm:$0xf]
        %v258 = vld [vmem:[%s240 + $0x10] sm:$0xf]
        %v259 = vld [vmem:[%s240 + $0x18] sm:$0xf]
        %v260 = vld [vmem:[%s240 + $0x20] sm:$0xf]
        %v261 = vld [vmem:[%s240 + $0x28] sm:$0xf]
        %v262 = vld [vmem:[%s240 + $0x30] sm:$0xf]
        %v263 = vld [vmem:[%s240 + $0x38] sm:$0xf]
        %v264 = vld [vmem:[%s245] sm:$0xf]
        %v265 = vld [vmem:[%s245 + $0x8] sm:$0xf]
        %v266 = vld [vmem:[%s245 + $0x10] sm:$0xf]
        %v267 = vld [vmem:[%s245 + $0x18] sm:$0xf]
        %v268 = vld [vmem:[%s245 + $0x20] sm:$0xf]
        %v269 = vld [vmem:[%s245 + $0x28] sm:$0xf]
        %v270 = vld [vmem:[%s245 + $0x30] sm:$0xf]
        %v271 = vld [vmem:[%s245 + $0x38] sm:$0xf]
        %v272 = vunpack.c.l.bf16 %v256
        %v273 = vunpack.c.l.bf16 %v257
        %v274 = vunpack.c.l.bf16 %v258
        %v275 = vunpack.c.l.bf16 %v259
        %v276 = vunpack.c.l.bf16 %v260
        %v277 = vunpack.c.l.bf16 %v261
        %v278 = vunpack.c.l.bf16 %v262
        %v279 = vunpack.c.l.bf16 %v263
        %v280 = vunpack.c.l.bf16 %v264
        %v281 = vunpack.c.l.bf16 %v265
        %v282 = vunpack.c.l.bf16 %v266
        %v283 = vunpack.c.l.bf16 %v267
        %v284 = vunpack.c.l.bf16 %v268
        %v285 = vunpack.c.l.bf16 %v269
        %v286 = vunpack.c.l.bf16 %v270
        %v287 = vunpack.c.l.bf16 %v271
        %v288 = vmax.f32 %v272, %v280
        %v289 = vmax.f32 %v273, %v281
        %v290 = vmax.f32 %v274, %v282
        %v291 = vmax.f32 %v275, %v283
        %v292 = vmax.f32 %v276, %v284
        %v293 = vmax.f32 %v277, %v285
        %v294 = vmax.f32 %v278, %v286
        %v295 = vmax.f32 %v279, %v287
        %v296 = vpack.c.bf16 %v288, %v288
        %v297 = vpack.c.bf16 %v289, %v289
        %v298 = vpack.c.bf16 %v290, %v290
        %v299 = vpack.c.bf16 %v291, %v291
        %v300 = vpack.c.bf16 %v292, %v292
        %v301 = vpack.c.bf16 %v293, %v293
        %v302 = vpack.c.bf16 %v294, %v294
        %v303 = vpack.c.bf16 %v295, %v295
        %v304 = vld [vmem:[%s240 + $0x4] sm:$0x1]
        %v305 = vld [vmem:[%s240 + $0xc] sm:$0x1]
        %v306 = vld [vmem:[%s240 + $0x14] sm:$0x1]
        %v307 = vld [vmem:[%s240 + $0x1c] sm:$0x1]
        %v308 = vld [vmem:[%s240 + $0x24] sm:$0x1]
        %v309 = vld [vmem:[%s240 + $0x2c] sm:$0x1]
        %v310 = vld [vmem:[%s240 + $0x34] sm:$0x1]
        %v311 = vld [vmem:[%s240 + $0x3c] sm:$0x1]
        %v312 = vunpack.c.l.bf16 %v296
        %v313 = vunpack.c.l.bf16 %v297
        %v314 = vunpack.c.l.bf16 %v298
        %v315 = vunpack.c.l.bf16 %v299
        %v316 = vunpack.c.l.bf16 %v300
        %v317 = vunpack.c.l.bf16 %v301
        %v318 = vunpack.c.l.bf16 %v302
        %v319 = vunpack.c.l.bf16 %v303
        %v320 = vunpack.c.l.bf16 %v304
        %v321 = vunpack.c.l.bf16 %v305
        %v322 = vunpack.c.l.bf16 %v306
        %v323 = vunpack.c.l.bf16 %v307
        %v324 = vunpack.c.l.bf16 %v308
        %v325 = vunpack.c.l.bf16 %v309
        %v326 = vunpack.c.l.bf16 %v310
        %v327 = vunpack.c.l.bf16 %v311
        %vm344 = vcmask 1046528
        %v345 = vrot.slane %v272, 1
        %v346 = vrot.slane %v320, 1
        %v347 = vsel %vm344, %v345, %v346
        %v348 = vrot.slane %v273, 1
        %v349 = vrot.slane %v321, 1
        %v350 = vsel %vm344, %v348, %v349
        %v351 = vrot.slane %v274, 1
        %v352 = vrot.slane %v322, 1
        %v353 = vsel %vm344, %v351, %v352
        %v354 = vrot.slane %v275, 1
        %v355 = vrot.slane %v323, 1
        %v356 = vsel %vm344, %v354, %v355
        %v357 = vrot.slane %v276, 1
        %v358 = vrot.slane %v324, 1
        %v359 = vsel %vm344, %v357, %v358
        %v360 = vrot.slane %v277, 1
        %v361 = vrot.slane %v325, 1
        %v362 = vsel %vm344, %v360, %v361
        %v363 = vrot.slane %v278, 1
        %v364 = vrot.slane %v326, 1
        %v365 = vsel %vm344, %v363, %v364
        %v366 = vrot.slane %v279, 1
        %v367 = vrot.slane %v327, 1
        %v368 = vsel %vm344, %v366, %v367
        %v377 = vmax.f32 %v312, %v347
        %v378 = vmax.f32 %v313, %v350
        %v379 = vmax.f32 %v314, %v353
        %v380 = vmax.f32 %v315, %v356
        %v381 = vmax.f32 %v316, %v359
        %v382 = vmax.f32 %v317, %v362
        %v383 = vmax.f32 %v318, %v365
        %v384 = vmax.f32 %v319, %v368
        %v385 = vpack.c.bf16 %v377, %v377
        %v386 = vpack.c.bf16 %v378, %v378
        %v387 = vpack.c.bf16 %v379, %v379
        %v388 = vpack.c.bf16 %v380, %v380
        %v389 = vpack.c.bf16 %v381, %v381
        %v390 = vpack.c.bf16 %v382, %v382
        %v391 = vpack.c.bf16 %v383, %v383
        %v392 = vpack.c.bf16 %v384, %v384
        %v393 = vld [vmem:[%s250] sm:$0xf]
        %v394 = vld [vmem:[%s250 + $0x8] sm:$0xf]
        %v395 = vld [vmem:[%s250 + $0x10] sm:$0xf]
        %v396 = vld [vmem:[%s250 + $0x18] sm:$0xf]
        %v397 = vld [vmem:[%s250 + $0x20] sm:$0xf]
        %v398 = vld [vmem:[%s250 + $0x28] sm:$0xf]
        %v399 = vld [vmem:[%s250 + $0x30] sm:$0xf]
        %v400 = vld [vmem:[%s250 + $0x38] sm:$0xf]
        %v401 = vunpack.c.l.bf16 %v385
        %v402 = vunpack.c.l.bf16 %v386
        %v403 = vunpack.c.l.bf16 %v387
        %v404 = vunpack.c.l.bf16 %v388
        %v405 = vunpack.c.l.bf16 %v389
        %v406 = vunpack.c.l.bf16 %v390
        %v407 = vunpack.c.l.bf16 %v391
        %v408 = vunpack.c.l.bf16 %v392
        %v409 = vunpack.c.l.bf16 %v393
        %v410 = vunpack.c.l.bf16 %v394
        %v411 = vunpack.c.l.bf16 %v395
        %v412 = vunpack.c.l.bf16 %v396
        %v413 = vunpack.c.l.bf16 %v397
        %v414 = vunpack.c.l.bf16 %v398
        %v415 = vunpack.c.l.bf16 %v399
        %v416 = vunpack.c.l.bf16 %v400
        %v417 = vmax.f32 %v401, %v409
        %v418 = vmax.f32 %v402, %v410
        %v419 = vmax.f32 %v403, %v411
        %v420 = vmax.f32 %v404, %v412
        %v421 = vmax.f32 %v405, %v413
        %v422 = vmax.f32 %v406, %v414
        %v423 = vmax.f32 %v407, %v415
        %v424 = vmax.f32 %v408, %v416
        %v425 = vpack.c.bf16 %v417, %v417
        %v426 = vpack.c.bf16 %v418, %v418
        %v427 = vpack.c.bf16 %v419, %v419
        %v428 = vpack.c.bf16 %v420, %v420
        %v429 = vpack.c.bf16 %v421, %v421
        %v430 = vpack.c.bf16 %v422, %v422
        %v431 = vpack.c.bf16 %v423, %v423
        %v432 = vpack.c.bf16 %v424, %v424
        %v433 = vld [vmem:[%s255] sm:$0xf]
        %v434 = vld [vmem:[%s255 + $0x8] sm:$0xf]
        %v435 = vld [vmem:[%s255 + $0x10] sm:$0xf]
        %v436 = vld [vmem:[%s255 + $0x18] sm:$0xf]
        %v437 = vld [vmem:[%s255 + $0x20] sm:$0xf]
        %v438 = vld [vmem:[%s255 + $0x28] sm:$0xf]
        %v439 = vld [vmem:[%s255 + $0x30] sm:$0xf]
        %v440 = vld [vmem:[%s255 + $0x38] sm:$0xf]
        %v441 = vunpack.c.l.bf16 %v425
        %v442 = vunpack.c.l.bf16 %v426
        %v443 = vunpack.c.l.bf16 %v427
        %v444 = vunpack.c.l.bf16 %v428
        %v445 = vunpack.c.l.bf16 %v429
        %v446 = vunpack.c.l.bf16 %v430
        %v447 = vunpack.c.l.bf16 %v431
        %v448 = vunpack.c.l.bf16 %v432
        %v449 = vunpack.c.l.bf16 %v433
        %v450 = vunpack.c.l.bf16 %v434
        %v451 = vunpack.c.l.bf16 %v435
        %v452 = vunpack.c.l.bf16 %v436
        %v453 = vunpack.c.l.bf16 %v437
        %v454 = vunpack.c.l.bf16 %v438
        %v455 = vunpack.c.l.bf16 %v439
        %v456 = vunpack.c.l.bf16 %v440
        %v457 = vmax.f32 %v441, %v449
        %v458 = vmax.f32 %v442, %v450
        %v459 = vmax.f32 %v443, %v451
        %v460 = vmax.f32 %v444, %v452
        %v461 = vmax.f32 %v445, %v453
        %v462 = vmax.f32 %v446, %v454
        %v463 = vmax.f32 %v447, %v455
        %v464 = vmax.f32 %v448, %v456
        %v465 = vpack.c.bf16 %v457, %v457
        %v466 = vpack.c.bf16 %v458, %v458
        %v467 = vpack.c.bf16 %v459, %v459
        %v468 = vpack.c.bf16 %v460, %v460
        %v469 = vpack.c.bf16 %v461, %v461
        %v470 = vpack.c.bf16 %v462, %v462
        %v471 = vpack.c.bf16 %v463, %v463
        %v472 = vpack.c.bf16 %v464, %v464
        %v473 = vld [vmem:[%s250 + $0x4] sm:$0x1]
        %v474 = vld [vmem:[%s250 + $0xc] sm:$0x1]
        %v475 = vld [vmem:[%s250 + $0x14] sm:$0x1]
        %v476 = vld [vmem:[%s250 + $0x1c] sm:$0x1]
        %v477 = vld [vmem:[%s250 + $0x24] sm:$0x1]
        %v478 = vld [vmem:[%s250 + $0x2c] sm:$0x1]
        %v479 = vld [vmem:[%s250 + $0x34] sm:$0x1]
        %v480 = vld [vmem:[%s250 + $0x3c] sm:$0x1]
        %v481 = vunpack.c.l.bf16 %v465
        %v482 = vunpack.c.l.bf16 %v466
        %v483 = vunpack.c.l.bf16 %v467
        %v484 = vunpack.c.l.bf16 %v468
        %v485 = vunpack.c.l.bf16 %v469
        %v486 = vunpack.c.l.bf16 %v470
        %v487 = vunpack.c.l.bf16 %v471
        %v488 = vunpack.c.l.bf16 %v472
        %v489 = vunpack.c.l.bf16 %v473
        %v490 = vunpack.c.l.bf16 %v474
        %v491 = vunpack.c.l.bf16 %v475
        %v492 = vunpack.c.l.bf16 %v476
        %v493 = vunpack.c.l.bf16 %v477
        %v494 = vunpack.c.l.bf16 %v478
        %v495 = vunpack.c.l.bf16 %v479
        %v496 = vunpack.c.l.bf16 %v480
        %v513 = vrot.slane %v409, 1
        %v514 = vrot.slane %v489, 1
        %v515 = vsel %vm344, %v513, %v514
        %v516 = vrot.slane %v410, 1
        %v517 = vrot.slane %v490, 1
        %v518 = vsel %vm344, %v516, %v517
        %v519 = vrot.slane %v411, 1
        %v520 = vrot.slane %v491, 1
        %v521 = vsel %vm344, %v519, %v520
        %v522 = vrot.slane %v412, 1
        %v523 = vrot.slane %v492, 1
        %v524 = vsel %vm344, %v522, %v523
        %v525 = vrot.slane %v413, 1
        %v526 = vrot.slane %v493, 1
        %v527 = vsel %vm344, %v525, %v526
        %v528 = vrot.slane %v414, 1
        %v529 = vrot.slane %v494, 1
        %v530 = vsel %vm344, %v528, %v529
        %v531 = vrot.slane %v415, 1
        %v532 = vrot.slane %v495, 1
        %v533 = vsel %vm344, %v531, %v532
        %v534 = vrot.slane %v416, 1
        %v535 = vrot.slane %v496, 1
        %v536 = vsel %vm344, %v534, %v535
        %v545 = vmax.f32 %v481, %v515
        %v546 = vmax.f32 %v482, %v518
        %v547 = vmax.f32 %v483, %v521
        %v548 = vmax.f32 %v484, %v524
        %v549 = vmax.f32 %v485, %v527
        %v550 = vmax.f32 %v486, %v530
        %v551 = vmax.f32 %v487, %v533
        %v552 = vmax.f32 %v488, %v536
        %v553 = vpack.c.bf16 %v545, %v545
        %v554 = vpack.c.bf16 %v546, %v546
        %v555 = vpack.c.bf16 %v547, %v547
        %v556 = vpack.c.bf16 %v548, %v548
        %v557 = vpack.c.bf16 %v549, %v549
        %v558 = vpack.c.bf16 %v550, %v550
        %v559 = vpack.c.bf16 %v551, %v551
        %v560 = vpack.c.bf16 %v552, %v552
        %s561 = scalar_lea.vmem %s240, 8
        %v562 = vld [vmem:[%s561] sm:$0xf]
        %v563 = vld [vmem:[%s561 + $0x8] sm:$0xf]
        %v564 = vld [vmem:[%s561 + $0x10] sm:$0xf]
        %v565 = vld [vmem:[%s561 + $0x18] sm:$0xf]
        %v566 = vld [vmem:[%s561 + $0x20] sm:$0xf]
        %v567 = vld [vmem:[%s561 + $0x28] sm:$0xf]
        %v568 = vld [vmem:[%s561 + $0x30] sm:$0xf]
        %v569 = vld [vmem:[%s561 + $0x38] sm:$0xf]
        %v570 = vunpack.c.l.bf16 %v553
        %v571 = vunpack.c.l.bf16 %v554
        %v572 = vunpack.c.l.bf16 %v555
        %v573 = vunpack.c.l.bf16 %v556
        %v574 = vunpack.c.l.bf16 %v557
        %v575 = vunpack.c.l.bf16 %v558
        %v576 = vunpack.c.l.bf16 %v559
        %v577 = vunpack.c.l.bf16 %v560
        %v578 = vunpack.c.l.bf16 %v562
        %v579 = vunpack.c.l.bf16 %v563
        %v580 = vunpack.c.l.bf16 %v564
        %v581 = vunpack.c.l.bf16 %v565
        %v582 = vunpack.c.l.bf16 %v566
        %v583 = vunpack.c.l.bf16 %v567
        %v584 = vunpack.c.l.bf16 %v568
        %v585 = vunpack.c.l.bf16 %v569
        %v586 = vmax.f32 %v570, %v578
        %v587 = vmax.f32 %v571, %v579
        %v588 = vmax.f32 %v572, %v580
        %v589 = vmax.f32 %v573, %v581
        %v590 = vmax.f32 %v574, %v582
        %v591 = vmax.f32 %v575, %v583
        %v592 = vmax.f32 %v576, %v584
        %v593 = vmax.f32 %v577, %v585
        %v594 = vpack.c.bf16 %v586, %v586
        %v595 = vpack.c.bf16 %v587, %v587
        %v596 = vpack.c.bf16 %v588, %v588
        %v597 = vpack.c.bf16 %v589, %v589
        %v598 = vpack.c.bf16 %v590, %v590
        %v599 = vpack.c.bf16 %v591, %v591
        %v600 = vpack.c.bf16 %v592, %v592
        %v601 = vpack.c.bf16 %v593, %v593
        %s602 = scalar_lea.vmem %s245, 8
        %v603 = vld [vmem:[%s602] sm:$0xf]
        %v604 = vld [vmem:[%s602 + $0x8] sm:$0xf]
        %v605 = vld [vmem:[%s602 + $0x10] sm:$0xf]
        %v606 = vld [vmem:[%s602 + $0x18] sm:$0xf]
        %v607 = vld [vmem:[%s602 + $0x20] sm:$0xf]
        %v608 = vld [vmem:[%s602 + $0x28] sm:$0xf]
        %v609 = vld [vmem:[%s602 + $0x30] sm:$0xf]
        %v610 = vld [vmem:[%s602 + $0x38] sm:$0xf]
        %v611 = vunpack.c.l.bf16 %v594
        %v612 = vunpack.c.l.bf16 %v595
        %v613 = vunpack.c.l.bf16 %v596
        %v614 = vunpack.c.l.bf16 %v597
        %v615 = vunpack.c.l.bf16 %v598
        %v616 = vunpack.c.l.bf16 %v599
        %v617 = vunpack.c.l.bf16 %v600
        %v618 = vunpack.c.l.bf16 %v601
        %v619 = vunpack.c.l.bf16 %v603
        %v620 = vunpack.c.l.bf16 %v604
        %v621 = vunpack.c.l.bf16 %v605
        %v622 = vunpack.c.l.bf16 %v606
        %v623 = vunpack.c.l.bf16 %v607
        %v624 = vunpack.c.l.bf16 %v608
        %v625 = vunpack.c.l.bf16 %v609
        %v626 = vunpack.c.l.bf16 %v610
        %v627 = vmax.f32 %v611, %v619
        %v628 = vmax.f32 %v612, %v620
        %v629 = vmax.f32 %v613, %v621
        %v630 = vmax.f32 %v614, %v622
        %v631 = vmax.f32 %v615, %v623
        %v632 = vmax.f32 %v616, %v624
        %v633 = vmax.f32 %v617, %v625
        %v634 = vmax.f32 %v618, %v626
        %v635 = vpack.c.bf16 %v627, %v627
        %v636 = vpack.c.bf16 %v628, %v628
        %v637 = vpack.c.bf16 %v629, %v629
        %v638 = vpack.c.bf16 %v630, %v630
        %v639 = vpack.c.bf16 %v631, %v631
        %v640 = vpack.c.bf16 %v632, %v632
        %v641 = vpack.c.bf16 %v633, %v633
        %v642 = vpack.c.bf16 %v634, %v634
        %v643 = vld [vmem:[%s561 + $0x4] sm:$0x1]
        %v644 = vld [vmem:[%s561 + $0xc] sm:$0x1]
        %v645 = vld [vmem:[%s561 + $0x14] sm:$0x1]
        %v646 = vld [vmem:[%s561 + $0x1c] sm:$0x1]
        %v647 = vld [vmem:[%s561 + $0x24] sm:$0x1]
        %v648 = vld [vmem:[%s561 + $0x2c] sm:$0x1]
        %v649 = vld [vmem:[%s561 + $0x34] sm:$0x1]
        %v650 = vld [vmem:[%s561 + $0x3c] sm:$0x1]
        %v651 = vunpack.c.l.bf16 %v635
        %v652 = vunpack.c.l.bf16 %v636
        %v653 = vunpack.c.l.bf16 %v637
        %v654 = vunpack.c.l.bf16 %v638
        %v655 = vunpack.c.l.bf16 %v639
        %v656 = vunpack.c.l.bf16 %v640
        %v657 = vunpack.c.l.bf16 %v641
        %v658 = vunpack.c.l.bf16 %v642
        %v659 = vunpack.c.l.bf16 %v643
        %v660 = vunpack.c.l.bf16 %v644
        %v661 = vunpack.c.l.bf16 %v645
        %v662 = vunpack.c.l.bf16 %v646
        %v663 = vunpack.c.l.bf16 %v647
        %v664 = vunpack.c.l.bf16 %v648
        %v665 = vunpack.c.l.bf16 %v649
        %v666 = vunpack.c.l.bf16 %v650
        %v683 = vrot.slane %v578, 1
        %v684 = vrot.slane %v659, 1
        %v685 = vsel %vm344, %v683, %v684
        %v686 = vrot.slane %v579, 1
        %v687 = vrot.slane %v660, 1
        %v688 = vsel %vm344, %v686, %v687
        %v689 = vrot.slane %v580, 1
        %v690 = vrot.slane %v661, 1
        %v691 = vsel %vm344, %v689, %v690
        %v692 = vrot.slane %v581, 1
        %v693 = vrot.slane %v662, 1
        %v694 = vsel %vm344, %v692, %v693
        %v695 = vrot.slane %v582, 1
        %v696 = vrot.slane %v663, 1
        %v697 = vsel %vm344, %v695, %v696
        %v698 = vrot.slane %v583, 1
        %v699 = vrot.slane %v664, 1
        %v700 = vsel %vm344, %v698, %v699
        %v701 = vrot.slane %v584, 1
        %v702 = vrot.slane %v665, 1
        %v703 = vsel %vm344, %v701, %v702
        %v704 = vrot.slane %v585, 1
        %v705 = vrot.slane %v666, 1
        %v706 = vsel %vm344, %v704, %v705
        %v715 = vmax.f32 %v651, %v685
        %v716 = vmax.f32 %v652, %v688
        %v717 = vmax.f32 %v653, %v691
        %v718 = vmax.f32 %v654, %v694
        %v719 = vmax.f32 %v655, %v697
        %v720 = vmax.f32 %v656, %v700
        %v721 = vmax.f32 %v657, %v703
        %v722 = vmax.f32 %v658, %v706
        %v723 = vpack.c.bf16 %v715, %v715
        %v724 = vpack.c.bf16 %v716, %v716
        %v725 = vpack.c.bf16 %v717, %v717
        %v726 = vpack.c.bf16 %v718, %v718
        %v727 = vpack.c.bf16 %v719, %v719
        %v728 = vpack.c.bf16 %v720, %v720
        %v729 = vpack.c.bf16 %v721, %v721
        %v730 = vpack.c.bf16 %v722, %v722
        %vm731 = vcmask 519168
        %732 = vst.msk [vmem:[%s235] sm:$0xf] %vm731, %v723
        %733 = vst.msk [vmem:[%s235 + $0x4] sm:$0xf] %vm731, %v724
        %734 = vst.msk [vmem:[%s235 + $0x8] sm:$0xf] %vm731, %v725
        %735 = vst.msk [vmem:[%s235 + $0xc] sm:$0xf] %vm731, %v726
        %736 = vst.msk [vmem:[%s235 + $0x10] sm:$0xf] %vm731, %v727
        %737 = vst.msk [vmem:[%s235 + $0x14] sm:$0xf] %vm731, %v728
        %738 = vst.msk [vmem:[%s235 + $0x18] sm:$0xf] %vm731, %v729
        %739 = vst.msk [vmem:[%s235 + $0x1c] sm:$0xf] %vm731, %v730
        %s740 = sand.u32 %s130, 1
        %s741 = scalar_lea.sflag [#allocation3], %s740
        %s742 = sand.u32 %s130, 1
        %s743 = smul.addr %s742, 32
        %s744 = scalar_lea.vmem [#allocation2], %s743
        // Predicated region
        $region37: #{_stem.3} parent=35 // pred_check
          %p745 = pneg %p140
        $region38: #{_stem.3} parent=35 // pred_check_branch
          %747 = sbr.rel (%p745) target = $region40
        $region39: #{_stem.3} parent=35 // pred_region
          %749 = vsyncadd %s741, 0
          %s750 = smul.addr %s18, 8
          %s751 = smul.addr %s750, 4
          %s752 = scalar_lea.hbm %s4, %s751
          %s753 = sshll.u32 %s744, 4
          %s754 = int_to_ptr.vmem [resolvable:$true] %s753
          %s755 = sshll.u32 %s752, 4
          %s756 = int_to_ptr.hbm [resolvable:$true] %s755
          %761 = dma.vmem_to_hbm [thread:$0]  %s754, 512, %s756, %s741, 64, 64, 4
        $region40: #{_stem.3} parent=35 // pred_fallthru
          _
      $region36: #{_stem.3} parent=5 // pred_fallthru
        _
      %p762 = scmp.le.s32.totalorder 2, %s13
      // Predicated region
      $region41: #{_stem.3} parent=5 // pred_check
        %p763 = pneg %p762
      $region42: #{_stem.3} parent=5 // pred_check_branch
        %765 = sbr.rel (%p763) target = $region44
      $region43: #{_stem.3} parent=5 // pred_region
        %s766 = ssub.s32 %s13, 2
        // Predicated region
        $region45: #{_stem.3} parent=43 // pred_check
          %p767 = pneg %p146
        $region46: #{_stem.3} parent=43 // pred_check_branch
          %769 = sbr.rel (%p767) target = $region48
        $region47: #{_stem.3} parent=43 // pred_region
          %s770 = sand.u32 %s131, 1
          %s771 = scalar_lea.sflag [#allocation3], %s770
          %s772 = sand.u32 %s131, 1
          %s773 = smul.addr %s772, 32
          %s774 = scalar_lea.vmem [#allocation2], %s773
          %776 = dma.done %s771, 512
        $region48: #{_stem.3} parent=43 // pred_fallthru
          _
      $region44: #{_stem.3} parent=5 // pred_fallthru
        _
    $region6: #{_stem.3} parent=1 // loop_footer
      %s17 = sadd.s32 1, %s13
    $region7: #{_stem.3} parent=1 // loop_footer_branch
      %12 = sbr.rel target = $region3
    $region8: #{_stem.3} parent=1 // loop_exit
      _
    %777 = vsyncpa [#allocation3], 1
    %s778 = scalar_lea.sflag [#allocation3], 1
    %779 = vsyncpa %s778, 1

// kernel: _stem.2
$region0: #{_stem.2}
  #allocation0 [shape = 'u32[]', space=smem, size = 0x4, offset = 0x4, fixed_abs, tag = 'smem constant byte address 0x4 - core index']
  #allocation1 [shape = 'u32[72,128]{1,0:T(1,128)}', space=vmem, size = 0x9000, scoped, tag = 'internal scratch']
  %s0 = inlined_call_operand.vmem [shape: bf16[512,256], index: 0, kind: input, shape index: {}]
  %s1 = inlined_call_operand.vmem [shape: bf16[256,128], index: 1, kind: input, shape index: {}]
  %s2 = inlined_call_operand.vmem [shape: f32[1,128], index: 2, kind: input, shape index: {}]
  %s3 = inlined_call_operand.vmem [shape: f32[1,128], index: 3, kind: input, shape index: {}]
  %s4 = inlined_call_operand.vmem [shape: bf16[512,128], index: 4, kind: output, shape index: {}]
  %s5 = sld [smem:[#allocation0]]
  $region26: #{_stem.2} parent=0
    _
  %s7 = ssub.s32 1, %s5
  %s8 = scalar_select 0, %s7, %s5
  // Predicated region
  $region2: #{_stem.2} parent=0 // pred_check
    _
  $region3: #{_stem.2} parent=0 // pred_check_branch
    %10 = sbr.rel (0) target = $region5
  $region4: #{_stem.2} parent=0 // pred_region
    _
  $region5: #{_stem.2} parent=0 // pred_fallthru
    _
  // Predicated region
  $region6: #{_stem.2} parent=0 // pred_check
    _
  $region7: #{_stem.2} parent=0 // pred_check_branch
    %12 = sbr.rel (0) target = $region9
  $region8: #{_stem.2} parent=0 // pred_region
    _
  $region9: #{_stem.2} parent=0 // pred_fallthru
    _
  // Predicated region
  $region10: #{_stem.2} parent=0 // pred_check
    _
  $region11: #{_stem.2} parent=0 // pred_check_branch
    %14 = sbr.rel (0) target = $region13
  $region12: #{_stem.2} parent=0 // pred_region
    _
  $region13: #{_stem.2} parent=0 // pred_fallthru
    _
  // Predicated region
  $region14: #{_stem.2} parent=0 // pred_check
    _
  $region15: #{_stem.2} parent=0 // pred_check_branch
    %16 = sbr.rel (0) target = $region17
  $region16: #{_stem.2} parent=0 // pred_region
    _
  $region17: #{_stem.2} parent=0 // pred_fallthru
    _
  %v17 = vld [vmem:[%s0] sm:$0xff]
  %v18 = vld [vmem:[%s0 + $0x8] sm:$0xff]
  %v19 = vld [vmem:[%s0 + $0x10] sm:$0xff]
  %v20 = vld [vmem:[%s0 + $0x18] sm:$0xff]
  %v21 = vld [vmem:[%s0 + $0x20] sm:$0xff]
  %v22 = vld [vmem:[%s0 + $0x28] sm:$0xff]
  %v23 = vld [vmem:[%s0 + $0x30] sm:$0xff]
  %v24 = vld [vmem:[%s0 + $0x38] sm:$0xff]
  %v25 = vld [vmem:[%s0 + $0x40] sm:$0xff]
  %v26 = vld [vmem:[%s0 + $0x48] sm:$0xff]
  %v27 = vld [vmem:[%s0 + $0x50] sm:$0xff]
  %v28 = vld [vmem:[%s0 + $0x58] sm:$0xff]
  %v29 = vld [vmem:[%s0 + $0x60] sm:$0xff]
  %v30 = vld [vmem:[%s0 + $0x68] sm:$0xff]
  %v31 = vld [vmem:[%s0 + $0x70] sm:$0xff]
  %v32 = vld [vmem:[%s0 + $0x78] sm:$0xff]
  %v33 = vld [vmem:[%s0 + $0x80] sm:$0xff]
  %v34 = vld [vmem:[%s0 + $0x88] sm:$0xff]
  %v35 = vld [vmem:[%s0 + $0x90] sm:$0xff]
  %v36 = vld [vmem:[%s0 + $0x98] sm:$0xff]
  %v37 = vld [vmem:[%s0 + $0xa0] sm:$0xff]
  %v38 = vld [vmem:[%s0 + $0xa8] sm:$0xff]
  %v39 = vld [vmem:[%s0 + $0xb0] sm:$0xff]
  %v40 = vld [vmem:[%s0 + $0xb8] sm:$0xff]
  %v41 = vld [vmem:[%s0 + $0xc0] sm:$0xff]
  %v42 = vld [vmem:[%s0 + $0xc8] sm:$0xff]
  %v43 = vld [vmem:[%s0 + $0xd0] sm:$0xff]
  %v44 = vld [vmem:[%s0 + $0xd8] sm:$0xff]
  %v45 = vld [vmem:[%s0 + $0xe0] sm:$0xff]
  %v46 = vld [vmem:[%s0 + $0xe8] sm:$0xff]
  %v47 = vld [vmem:[%s0 + $0xf0] sm:$0xff]
  %v48 = vld [vmem:[%s0 + $0xf8] sm:$0xff]
  %v49 = vld [vmem:[%s0 + $0x100] sm:$0xff]
  %v50 = vld [vmem:[%s0 + $0x108] sm:$0xff]
  %v51 = vld [vmem:[%s0 + $0x110] sm:$0xff]
  %v52 = vld [vmem:[%s0 + $0x118] sm:$0xff]
  %v53 = vld [vmem:[%s0 + $0x120] sm:$0xff]
  %v54 = vld [vmem:[%s0 + $0x128] sm:$0xff]
  %v55 = vld [vmem:[%s0 + $0x130] sm:$0xff]
  %v56 = vld [vmem:[%s0 + $0x138] sm:$0xff]
  %v57 = vld [vmem:[%s0 + $0x140] sm:$0xff]
  %v58 = vld [vmem:[%s0 + $0x148] sm:$0xff]
  %v59 = vld [vmem:[%s0 + $0x150] sm:$0xff]
  %v60 = vld [vmem:[%s0 + $0x158] sm:$0xff]
  %v61 = vld [vmem:[%s0 + $0x160] sm:$0xff]
  %v62 = vld [vmem:[%s0 + $0x168] sm:$0xff]
  %v63 = vld [vmem:[%s0 + $0x170] sm:$0xff]
  %v64 = vld [vmem:[%s0 + $0x178] sm:$0xff]
  %v65 = vld [vmem:[%s0 + $0x180] sm:$0xff]
  %v66 = vld [vmem:[%s0 + $0x188] sm:$0xff]
  %v67 = vld [vmem:[%s0 + $0x190] sm:$0xff]
  %v68 = vld [vmem:[%s0 + $0x198] sm:$0xff]
  %v69 = vld [vmem:[%s0 + $0x1a0] sm:$0xff]
  %v70 = vld [vmem:[%s0 + $0x1a8] sm:$0xff]
  %v71 = vld [vmem:[%s0 + $0x1b0] sm:$0xff]
  %v72 = vld [vmem:[%s0 + $0x1b8] sm:$0xff]
  %v73 = vld [vmem:[%s0 + $0x1c0] sm:$0xff]
  %v74 = vld [vmem:[%s0 + $0x1c8] sm:$0xff]
  %v75 = vld [vmem:[%s0 + $0x1d0] sm:$0xff]
  %v76 = vld [vmem:[%s0 + $0x1d8] sm:$0xff]
  %v77 = vld [vmem:[%s0 + $0x1e0] sm:$0xff]
  %v78 = vld [vmem:[%s0 + $0x1e8] sm:$0xff]
  %v79 = vld [vmem:[%s0 + $0x1f0] sm:$0xff]
  %v80 = vld [vmem:[%s0 + $0x1f8] sm:$0xff]
  %v81 = vld [vmem:[%s1] sm:$0xf]
  %v82 = vld [vmem:[%s1 + $0x4] sm:$0xf]
  %v83 = vld [vmem:[%s1 + $0x8] sm:$0xf]
  %v84 = vld [vmem:[%s1 + $0xc] sm:$0xf]
  %v85 = vld [vmem:[%s1 + $0x10] sm:$0xf]
  %v86 = vld [vmem:[%s1 + $0x14] sm:$0xf]
  %v87 = vld [vmem:[%s1 + $0x18] sm:$0xf]
  %v88 = vld [vmem:[%s1 + $0x1c] sm:$0xf]
  %v89 = vld [vmem:[%s1 + $0x20] sm:$0xf]
  %v90 = vld [vmem:[%s1 + $0x24] sm:$0xf]
  %v91 = vld [vmem:[%s1 + $0x28] sm:$0xf]
  %v92 = vld [vmem:[%s1 + $0x2c] sm:$0xf]
  %v93 = vld [vmem:[%s1 + $0x30] sm:$0xf]
  %v94 = vld [vmem:[%s1 + $0x34] sm:$0xf]
  %v95 = vld [vmem:[%s1 + $0x38] sm:$0xf]
  %v96 = vld [vmem:[%s1 + $0x3c] sm:$0xf]
  %v97 = vld [vmem:[%s1 + $0x40] sm:$0xf]
  %v98 = vld [vmem:[%s1 + $0x44] sm:$0xf]
  %v99 = vld [vmem:[%s1 + $0x48] sm:$0xf]
  %v100 = vld [vmem:[%s1 + $0x4c] sm:$0xf]
  %v101 = vld [vmem:[%s1 + $0x50] sm:$0xf]
  %v102 = vld [vmem:[%s1 + $0x54] sm:$0xf]
  %v103 = vld [vmem:[%s1 + $0x58] sm:$0xf]
  %v104 = vld [vmem:[%s1 + $0x5c] sm:$0xf]
  %v105 = vld [vmem:[%s1 + $0x60] sm:$0xf]
  %v106 = vld [vmem:[%s1 + $0x64] sm:$0xf]
  %v107 = vld [vmem:[%s1 + $0x68] sm:$0xf]
  %v108 = vld [vmem:[%s1 + $0x6c] sm:$0xf]
  %v109 = vld [vmem:[%s1 + $0x70] sm:$0xf]
  %v110 = vld [vmem:[%s1 + $0x74] sm:$0xf]
  %v111 = vld [vmem:[%s1 + $0x78] sm:$0xf]
  %v112 = vld [vmem:[%s1 + $0x7c] sm:$0xf]
  %v177 = vunpack.c.l.b16 %v17
  %v178 = vunpack.c.h.b16 %v17
  %v179 = vunpack.c.l.b16 %v18
  %v180 = vunpack.c.h.b16 %v18
  %v181 = vunpack.c.l.b16 %v19
  %v182 = vunpack.c.h.b16 %v19
  %v183 = vunpack.c.l.b16 %v20
  %v184 = vunpack.c.h.b16 %v20
  %v185 = vunpack.c.l.b16 %v21
  %v186 = vunpack.c.h.b16 %v21
  %v187 = vunpack.c.l.b16 %v22
  %v188 = vunpack.c.h.b16 %v22
  %v189 = vunpack.c.l.b16 %v23
  %v190 = vunpack.c.h.b16 %v23
  %v191 = vunpack.c.l.b16 %v24
  %v192 = vunpack.c.h.b16 %v24
  %v193 = vunpack.c.l.b16 %v25
  %v194 = vunpack.c.h.b16 %v25
  %v195 = vunpack.c.l.b16 %v26
  %v196 = vunpack.c.h.b16 %v26
  %v197 = vunpack.c.l.b16 %v27
  %v198 = vunpack.c.h.b16 %v27
  %v199 = vunpack.c.l.b16 %v28
  %v200 = vunpack.c.h.b16 %v28
  %v201 = vunpack.c.l.b16 %v29
  %v202 = vunpack.c.h.b16 %v29
  %v203 = vunpack.c.l.b16 %v30
  %v204 = vunpack.c.h.b16 %v30
  %v205 = vunpack.c.l.b16 %v31
  %v206 = vunpack.c.h.b16 %v31
  %v207 = vunpack.c.l.b16 %v32
  %v208 = vunpack.c.h.b16 %v32
  %v209 = vunpack.c.l.b16 %v33
  %v210 = vunpack.c.h.b16 %v33
  %v211 = vunpack.c.l.b16 %v34
  %v212 = vunpack.c.h.b16 %v34
  %v213 = vunpack.c.l.b16 %v35
  %v214 = vunpack.c.h.b16 %v35
  %v215 = vunpack.c.l.b16 %v36
  %v216 = vunpack.c.h.b16 %v36
  %v217 = vunpack.c.l.b16 %v37
  %v218 = vunpack.c.h.b16 %v37
  %v219 = vunpack.c.l.b16 %v38
  %v220 = vunpack.c.h.b16 %v38
  %v221 = vunpack.c.l.b16 %v39
  %v222 = vunpack.c.h.b16 %v39
  %v223 = vunpack.c.l.b16 %v40
  %v224 = vunpack.c.h.b16 %v40
  %v225 = vunpack.c.l.b16 %v41
  %v226 = vunpack.c.h.b16 %v41
  %v227 = vunpack.c.l.b16 %v42
  %v228 = vunpack.c.h.b16 %v42
  %v229 = vunpack.c.l.b16 %v43
  %v230 = vunpack.c.h.b16 %v43
  %v231 = vunpack.c.l.b16 %v44
  %v232 = vunpack.c.h.b16 %v44
  %v233 = vunpack.c.l.b16 %v45
  %v234 = vunpack.c.h.b16 %v45
  %v235 = vunpack.c.l.b16 %v46
  %v236 = vunpack.c.h.b16 %v46
  %v237 = vunpack.c.l.b16 %v47
  %v238 = vunpack.c.h.b16 %v47
  %v239 = vunpack.c.l.b16 %v48
  %v240 = vunpack.c.h.b16 %v48
  %v241 = vunpack.c.l.b16 %v49
  %v242 = vunpack.c.h.b16 %v49
  %v243 = vunpack.c.l.b16 %v50
  %v244 = vunpack.c.h.b16 %v50
  %v245 = vunpack.c.l.b16 %v51
  %v246 = vunpack.c.h.b16 %v51
  %v247 = vunpack.c.l.b16 %v52
  %v248 = vunpack.c.h.b16 %v52
  %v249 = vunpack.c.l.b16 %v53
  %v250 = vunpack.c.h.b16 %v53
  %v251 = vunpack.c.l.b16 %v54
  %v252 = vunpack.c.h.b16 %v54
  %v253 = vunpack.c.l.b16 %v55
  %v254 = vunpack.c.h.b16 %v55
  %v255 = vunpack.c.l.b16 %v56
  %v256 = vunpack.c.h.b16 %v56
  %v257 = vunpack.c.l.b16 %v57
  %v258 = vunpack.c.h.b16 %v57
  %v259 = vunpack.c.l.b16 %v58
  %v260 = vunpack.c.h.b16 %v58
  %v261 = vunpack.c.l.b16 %v59
  %v262 = vunpack.c.h.b16 %v59
  %v263 = vunpack.c.l.b16 %v60
  %v264 = vunpack.c.h.b16 %v60
  %v265 = vunpack.c.l.b16 %v61
  %v266 = vunpack.c.h.b16 %v61
  %v267 = vunpack.c.l.b16 %v62
  %v268 = vunpack.c.h.b16 %v62
  %v269 = vunpack.c.l.b16 %v63
  %v270 = vunpack.c.h.b16 %v63
  %v271 = vunpack.c.l.b16 %v64
  %v272 = vunpack.c.h.b16 %v64
  %v273 = vunpack.c.l.b16 %v65
  %v274 = vunpack.c.h.b16 %v65
  %v275 = vunpack.c.l.b16 %v66
  %v276 = vunpack.c.h.b16 %v66
  %v277 = vunpack.c.l.b16 %v67
  %v278 = vunpack.c.h.b16 %v67
  %v279 = vunpack.c.l.b16 %v68
  %v280 = vunpack.c.h.b16 %v68
  %v281 = vunpack.c.l.b16 %v69
  %v282 = vunpack.c.h.b16 %v69
  %v283 = vunpack.c.l.b16 %v70
  %v284 = vunpack.c.h.b16 %v70
  %v285 = vunpack.c.l.b16 %v71
  %v286 = vunpack.c.h.b16 %v71
  %v287 = vunpack.c.l.b16 %v72
  %v288 = vunpack.c.h.b16 %v72
  %v289 = vunpack.c.l.b16 %v73
  %v290 = vunpack.c.h.b16 %v73
  %v291 = vunpack.c.l.b16 %v74
  %v292 = vunpack.c.h.b16 %v74
  %v293 = vunpack.c.l.b16 %v75
  %v294 = vunpack.c.h.b16 %v75
  %v295 = vunpack.c.l.b16 %v76
  %v296 = vunpack.c.h.b16 %v76
  %v297 = vunpack.c.l.b16 %v77
  %v298 = vunpack.c.h.b16 %v77
  %v299 = vunpack.c.l.b16 %v78
  %v300 = vunpack.c.h.b16 %v78
  %v301 = vunpack.c.l.b16 %v79
  %v302 = vunpack.c.h.b16 %v79
  %v303 = vunpack.c.l.b16 %v80
  %v304 = vunpack.c.h.b16 %v80
  %v305 = vpack.c.b16 %v179, %v177
  %v306 = vpack.c.b16 %v180, %v178
  %v307 = vpack.c.b16 %v183, %v181
  %v308 = vpack.c.b16 %v184, %v182
  %v309 = vpack.c.b16 %v187, %v185
  %v310 = vpack.c.b16 %v188, %v186
  %v311 = vpack.c.b16 %v191, %v189
  %v312 = vpack.c.b16 %v192, %v190
  %v313 = vpack.c.b16 %v195, %v193
  %v314 = vpack.c.b16 %v196, %v194
  %v315 = vpack.c.b16 %v199, %v197
  %v316 = vpack.c.b16 %v200, %v198
  %v317 = vpack.c.b16 %v203, %v201
  %v318 = vpack.c.b16 %v204, %v202
  %v319 = vpack.c.b16 %v207, %v205
  %v320 = vpack.c.b16 %v208, %v206
  %v321 = vpack.c.b16 %v211, %v209
  %v322 = vpack.c.b16 %v212, %v210
  %v323 = vpack.c.b16 %v215, %v213
  %v324 = vpack.c.b16 %v216, %v214
  %v325 = vpack.c.b16 %v219, %v217
  %v326 = vpack.c.b16 %v220, %v218
  %v327 = vpack.c.b16 %v223, %v221
  %v328 = vpack.c.b16 %v224, %v222
  %v329 = vpack.c.b16 %v227, %v225
  %v330 = vpack.c.b16 %v228, %v226
  %v331 = vpack.c.b16 %v231, %v229
  %v332 = vpack.c.b16 %v232, %v230
  %v333 = vpack.c.b16 %v235, %v233
  %v334 = vpack.c.b16 %v236, %v234
  %v335 = vpack.c.b16 %v239, %v237
  %v336 = vpack.c.b16 %v240, %v238
  %v337 = vpack.c.b16 %v243, %v241
  %v338 = vpack.c.b16 %v244, %v242
  %v339 = vpack.c.b16 %v247, %v245
  %v340 = vpack.c.b16 %v248, %v246
  %v341 = vpack.c.b16 %v251, %v249
  %v342 = vpack.c.b16 %v252, %v250
  %v343 = vpack.c.b16 %v255, %v253
  %v344 = vpack.c.b16 %v256, %v254
  %v345 = vpack.c.b16 %v259, %v257
  %v346 = vpack.c.b16 %v260, %v258
  %v347 = vpack.c.b16 %v263, %v261
  %v348 = vpack.c.b16 %v264, %v262
  %v349 = vpack.c.b16 %v267, %v265
  %v350 = vpack.c.b16 %v268, %v266
  %v351 = vpack.c.b16 %v271, %v269
  %v352 = vpack.c.b16 %v272, %v270
  %v353 = vpack.c.b16 %v275, %v273
  %v354 = vpack.c.b16 %v276, %v274
  %v355 = vpack.c.b16 %v279, %v277
  %v356 = vpack.c.b16 %v280, %v278
  %v357 = vpack.c.b16 %v283, %v281
  %v358 = vpack.c.b16 %v284, %v282
  %v359 = vpack.c.b16 %v287, %v285
  %v360 = vpack.c.b16 %v288, %v286
  %v361 = vpack.c.b16 %v291, %v289
  %v362 = vpack.c.b16 %v292, %v290
  %v363 = vpack.c.b16 %v295, %v293
  %v364 = vpack.c.b16 %v296, %v294
  %v365 = vpack.c.b16 %v299, %v297
  %v366 = vpack.c.b16 %v300, %v298
  %v367 = vpack.c.b16 %v303, %v301
  %v368 = vpack.c.b16 %v304, %v302
  %v465 = vunpack.c.l.b16 %v81
  %v466 = vunpack.c.l.b16 %v82
  %v467 = vunpack.c.l.b16 %v83
  %v468 = vunpack.c.l.b16 %v84
  %v469 = vunpack.c.l.b16 %v85
  %v470 = vunpack.c.l.b16 %v86
  %v471 = vunpack.c.l.b16 %v87
  %v472 = vunpack.c.l.b16 %v88
  %v473 = vunpack.c.l.b16 %v89
  %v474 = vunpack.c.l.b16 %v90
  %v475 = vunpack.c.l.b16 %v91
  %v476 = vunpack.c.l.b16 %v92
  %v477 = vunpack.c.l.b16 %v93
  %v478 = vunpack.c.l.b16 %v94
  %v479 = vunpack.c.l.b16 %v95
  %v480 = vunpack.c.l.b16 %v96
  %v481 = vunpack.c.l.b16 %v97
  %v482 = vunpack.c.l.b16 %v98
  %v483 = vunpack.c.l.b16 %v99
  %v484 = vunpack.c.l.b16 %v100
  %v485 = vunpack.c.l.b16 %v101
  %v486 = vunpack.c.l.b16 %v102
  %v487 = vunpack.c.l.b16 %v103
  %v488 = vunpack.c.l.b16 %v104
  %v489 = vunpack.c.l.b16 %v105
  %v490 = vunpack.c.l.b16 %v106
  %v491 = vunpack.c.l.b16 %v107
  %v492 = vunpack.c.l.b16 %v108
  %v493 = vunpack.c.l.b16 %v109
  %v494 = vunpack.c.l.b16 %v110
  %v495 = vunpack.c.l.b16 %v111
  %v496 = vunpack.c.l.b16 %v112
  %v497 = vpack.c.b16 %v466, %v465
  %v498 = vpack.c.b16 %v468, %v467
  %v499 = vpack.c.b16 %v470, %v469
  %v500 = vpack.c.b16 %v472, %v471
  %v501 = vpack.c.b16 %v474, %v473
  %v502 = vpack.c.b16 %v476, %v475
  %v503 = vpack.c.b16 %v478, %v477
  %v504 = vpack.c.b16 %v480, %v479
  %v505 = vpack.c.b16 %v482, %v481
  %v506 = vpack.c.b16 %v484, %v483
  %v507 = vpack.c.b16 %v486, %v485
  %v508 = vpack.c.b16 %v488, %v487
  %v509 = vpack.c.b16 %v490, %v489
  %v510 = vpack.c.b16 %v492, %v491
  %v511 = vpack.c.b16 %v494, %v493
  %v512 = vpack.c.b16 %v496, %v495
  %529 = vmatpush.bf16.msra.mxu0 %v504
  %530 = vmatpush.bf16.msra.mxu0 %v503
  %531 = vmatpush.bf16.msra.mxu0 %v502
  %532 = vmatpush.bf16.msra.mxu0 %v501
  %533 = vmatpush.bf16.msra.mxu0 %v500
  %534 = vmatpush.bf16.msra.mxu0 %v499
  %535 = vmatpush.bf16.msra.mxu0 %v498
  %536 = vmatpush.bf16.msra.mxu0 %v497
  %537 = vmatmul.bf16.gmra.mxu0 %v305
  %v538 = vpop.f32.mrf.mxu0
  %v539 = vadd.f32 0.0, %v538
  %v540 = vpop.f32.mrf.mxu0
  %v541 = vadd.f32 0.0, %v540
  %542 = vmatmul.bf16.gmra.mxu0 %v307
  %v543 = vpop.f32.mrf.mxu0
  %v544 = vadd.f32 0.0, %v543
  %v545 = vpop.f32.mrf.mxu0
  %v546 = vadd.f32 0.0, %v545
  %547 = vmatmul.bf16.gmra.mxu0 %v309
  %v548 = vpop.f32.mrf.mxu0
  %v549 = vadd.f32 0.0, %v548
  %v550 = vpop.f32.mrf.mxu0
  %v551 = vadd.f32 0.0, %v550
  %552 = vmatmul.bf16.gmra.mxu0 %v311
  %v553 = vpop.f32.mrf.mxu0
  %v554 = vadd.f32 0.0, %v553
  %v555 = vpop.f32.mrf.mxu0
  %v556 = vadd.f32 0.0, %v555
  %557 = vmatmul.bf16.gmra.mxu0 %v313
  %v558 = vpop.f32.mrf.mxu0
  %v559 = vadd.f32 0.0, %v558
  %v560 = vpop.f32.mrf.mxu0
  %v561 = vadd.f32 0.0, %v560
  %562 = vmatmul.bf16.gmra.mxu0 %v315
  %v563 = vpop.f32.mrf.mxu0
  %v564 = vadd.f32 0.0, %v563
  %v565 = vpop.f32.mrf.mxu0
  %v566 = vadd.f32 0.0, %v565
  %567 = vmatmul.bf16.gmra.mxu0 %v317
  %v568 = vpop.f32.mrf.mxu0
  %v569 = vadd.f32 0.0, %v568
  %v570 = vpop.f32.mrf.mxu0
  %v571 = vadd.f32 0.0, %v570
  %572 = vmatmul.bf16.gmra.mxu0 %v319
  %v573 = vpop.f32.mrf.mxu0
  %v574 = vadd.f32 0.0, %v573
  %v575 = vpop.f32.mrf.mxu0
  %v576 = vadd.f32 0.0, %v575
  %577 = vmatmul.bf16.gmra.mxu0 %v321
  %v578 = vpop.f32.mrf.mxu0
  %v579 = vadd.f32 0.0, %v578
  %v580 = vpop.f32.mrf.mxu0
  %v581 = vadd.f32 0.0, %v580
  %582 = vmatmul.bf16.gmra.mxu0 %v323
  %v583 = vpop.f32.mrf.mxu0
  %v584 = vadd.f32 0.0, %v583
  %v585 = vpop.f32.mrf.mxu0
  %v586 = vadd.f32 0.0, %v585
  %587 = vmatmul.bf16.gmra.mxu0 %v325
  %v588 = vpop.f32.mrf.mxu0
  %v589 = vadd.f32 0.0, %v588
  %v590 = vpop.f32.mrf.mxu0
  %v591 = vadd.f32 0.0, %v590
  %592 = vmatmul.bf16.gmra.mxu0 %v327
  %v593 = vpop.f32.mrf.mxu0
  %v594 = vadd.f32 0.0, %v593
  %v595 = vpop.f32.mrf.mxu0
  %v596 = vadd.f32 0.0, %v595
  %597 = vmatmul.bf16.gmra.mxu0 %v329
  %v598 = vpop.f32.mrf.mxu0
  %v599 = vadd.f32 0.0, %v598
  %v600 = vpop.f32.mrf.mxu0
  %v601 = vadd.f32 0.0, %v600
  %602 = vmatmul.bf16.gmra.mxu0 %v331
  %v603 = vpop.f32.mrf.mxu0
  %v604 = vadd.f32 0.0, %v603
  %v605 = vpop.f32.mrf.mxu0
  %v606 = vadd.f32 0.0, %v605
  %607 = vmatmul.bf16.gmra.mxu0 %v333
  %v608 = vpop.f32.mrf.mxu0
  %v609 = vadd.f32 0.0, %v608
  %v610 = vpop.f32.mrf.mxu0
  %v611 = vadd.f32 0.0, %v610
  %612 = vmatmul.bf16.gmra.mxu0 %v335
  %v613 = vpop.f32.mrf.mxu0
  %v614 = vadd.f32 0.0, %v613
  %v615 = vpop.f32.mrf.mxu0
  %v616 = vadd.f32 0.0, %v615
  %617 = vmatmul.bf16.gmra.mxu0 %v337
  %v618 = vpop.f32.mrf.mxu0
  %v619 = vadd.f32 0.0, %v618
  %v620 = vpop.f32.mrf.mxu0
  %v621 = vadd.f32 0.0, %v620
  %622 = vmatmul.bf16.gmra.mxu0 %v339
  %v623 = vpop.f32.mrf.mxu0
  %v624 = vadd.f32 0.0, %v623
  %v625 = vpop.f32.mrf.mxu0
  %v626 = vadd.f32 0.0, %v625
  %627 = vmatmul.bf16.gmra.mxu0 %v341
  %v628 = vpop.f32.mrf.mxu0
  %v629 = vadd.f32 0.0, %v628
  %v630 = vpop.f32.mrf.mxu0
  %v631 = vadd.f32 0.0, %v630
  %632 = vmatmul.bf16.gmra.mxu0 %v343
  %v633 = vpop.f32.mrf.mxu0
  %v634 = vadd.f32 0.0, %v633
  %v635 = vpop.f32.mrf.mxu0
  %v636 = vadd.f32 0.0, %v635
  %637 = vmatmul.bf16.gmra.mxu0 %v345
  %v638 = vpop.f32.mrf.mxu0
  %v639 = vadd.f32 0.0, %v638
  %v640 = vpop.f32.mrf.mxu0
  %v641 = vadd.f32 0.0, %v640
  %642 = vmatmul.bf16.gmra.mxu0 %v347
  %v643 = vpop.f32.mrf.mxu0
  %v644 = vadd.f32 0.0, %v643
  %v645 = vpop.f32.mrf.mxu0
  %v646 = vadd.f32 0.0, %v645
  %647 = vmatmul.bf16.gmra.mxu0 %v349
  %v648 = vpop.f32.mrf.mxu0
  %v649 = vadd.f32 0.0, %v648
  %v650 = vpop.f32.mrf.mxu0
  %v651 = vadd.f32 0.0, %v650
  %652 = vmatmul.bf16.gmra.mxu0 %v351
  %v653 = vpop.f32.mrf.mxu0
  %v654 = vadd.f32 0.0, %v653
  %v655 = vpop.f32.mrf.mxu0
  %v656 = vadd.f32 0.0, %v655
  %657 = vmatmul.bf16.gmra.mxu0 %v353
  %v658 = vpop.f32.mrf.mxu0
  %v659 = vadd.f32 0.0, %v658
  %v660 = vpop.f32.mrf.mxu0
  %v661 = vadd.f32 0.0, %v660
  %662 = vmatmul.bf16.gmra.mxu0 %v355
  %v663 = vpop.f32.mrf.mxu0
  %v664 = vadd.f32 0.0, %v663
  %v665 = vpop.f32.mrf.mxu0
  %v666 = vadd.f32 0.0, %v665
  %667 = vmatmul.bf16.gmra.mxu0 %v357
  %v668 = vpop.f32.mrf.mxu0
  %v669 = vadd.f32 0.0, %v668
  %v670 = vpop.f32.mrf.mxu0
  %v671 = vadd.f32 0.0, %v670
  %672 = vmatmul.bf16.gmra.mxu0 %v359
  %v673 = vpop.f32.mrf.mxu0
  %v674 = vadd.f32 0.0, %v673
  %v675 = vpop.f32.mrf.mxu0
  %v676 = vadd.f32 0.0, %v675
  %677 = vmatmul.bf16.gmra.mxu0 %v361
  %v678 = vpop.f32.mrf.mxu0
  %v679 = vadd.f32 0.0, %v678
  %v680 = vpop.f32.mrf.mxu0
  %v681 = vadd.f32 0.0, %v680
  %682 = vmatmul.bf16.gmra.mxu0 %v363
  %v683 = vpop.f32.mrf.mxu0
  %v684 = vadd.f32 0.0, %v683
  %v685 = vpop.f32.mrf.mxu0
  %v686 = vadd.f32 0.0, %v685
  %687 = vmatmul.bf16.gmra.mxu0 %v365
  %v688 = vpop.f32.mrf.mxu0
  %v689 = vadd.f32 0.0, %v688
  %v690 = vpop.f32.mrf.mxu0
  %v691 = vadd.f32 0.0, %v690
  %692 = vmatmul.bf16.gmra.mxu0 %v367
  %v693 = vpop.f32.mrf.mxu0
  %v694 = vadd.f32 0.0, %v693
  %v695 = vpop.f32.mrf.mxu0
  %v696 = vadd.f32 0.0, %v695
  %697 = vdwg.mxu0
  %698 = vmatpush.bf16.msra.mxu0 %v512
  %699 = vmatpush.bf16.msra.mxu0 %v511
  %700 = vmatpush.bf16.msra.mxu0 %v510
  %701 = vmatpush.bf16.msra.mxu0 %v509
  %702 = vmatpush.bf16.msra.mxu0 %v508
  %703 = vmatpush.bf16.msra.mxu0 %v507
  %704 = vmatpush.bf16.msra.mxu0 %v506
  %705 = vmatpush.bf16.msra.mxu0 %v505
  %706 = vmatmul.bf16.gmra.mxu0 %v306
  %v707 = vpop.f32.mrf.mxu0
  %v708 = vadd.f32 %v539, %v707
  %v709 = vpop.f32.mrf.mxu0
  %v710 = vadd.f32 %v541, %v709
  %711 = vmatmul.bf16.gmra.mxu0 %v308
  %v712 = vpop.f32.mrf.mxu0
  %v713 = vadd.f32 %v544, %v712
  %v714 = vpop.f32.mrf.mxu0
  %v715 = vadd.f32 %v546, %v714
  %716 = vmatmul.bf16.gmra.mxu0 %v310
  %v717 = vpop.f32.mrf.mxu0
  %v718 = vadd.f32 %v549, %v717
  %v719 = vpop.f32.mrf.mxu0
  %v720 = vadd.f32 %v551, %v719
  %721 = vmatmul.bf16.gmra.mxu0 %v312
  %v722 = vpop.f32.mrf.mxu0
  %v723 = vadd.f32 %v554, %v722
  %v724 = vpop.f32.mrf.mxu0
  %v725 = vadd.f32 %v556, %v724
  %726 = vmatmul.bf16.gmra.mxu0 %v314
  %v727 = vpop.f32.mrf.mxu0
  %v728 = vadd.f32 %v559, %v727
  %v729 = vpop.f32.mrf.mxu0
  %v730 = vadd.f32 %v561, %v729
  %731 = vmatmul.bf16.gmra.mxu0 %v316
  %v732 = vpop.f32.mrf.mxu0
  %v733 = vadd.f32 %v564, %v732
  %v734 = vpop.f32.mrf.mxu0
  %v735 = vadd.f32 %v566, %v734
  %736 = vmatmul.bf16.gmra.mxu0 %v318
  %v737 = vpop.f32.mrf.mxu0
  %v738 = vadd.f32 %v569, %v737
  %v739 = vpop.f32.mrf.mxu0
  %v740 = vadd.f32 %v571, %v739
  %741 = vmatmul.bf16.gmra.mxu0 %v320
  %v742 = vpop.f32.mrf.mxu0
  %v743 = vadd.f32 %v574, %v742
  %v744 = vpop.f32.mrf.mxu0
  %v745 = vadd.f32 %v576, %v744
  %746 = vmatmul.bf16.gmra.mxu0 %v322
  %v747 = vpop.f32.mrf.mxu0
  %v748 = vadd.f32 %v579, %v747
  %v749 = vpop.f32.mrf.mxu0
  %v750 = vadd.f32 %v581, %v749
  %751 = vmatmul.bf16.gmra.mxu0 %v324
  %v752 = vpop.f32.mrf.mxu0
  %v753 = vadd.f32 %v584, %v752
  %v754 = vpop.f32.mrf.mxu0
  %v755 = vadd.f32 %v586, %v754
  %756 = vmatmul.bf16.gmra.mxu0 %v326
  %v757 = vpop.f32.mrf.mxu0
  %v758 = vadd.f32 %v589, %v757
  %v759 = vpop.f32.mrf.mxu0
  %v760 = vadd.f32 %v591, %v759
  %761 = vmatmul.bf16.gmra.mxu0 %v328
  %v762 = vpop.f32.mrf.mxu0
  %v763 = vadd.f32 %v594, %v762
  %v764 = vpop.f32.mrf.mxu0
  %v765 = vadd.f32 %v596, %v764
  %766 = vmatmul.bf16.gmra.mxu0 %v330
  %v767 = vpop.f32.mrf.mxu0
  %v768 = vadd.f32 %v599, %v767
  %v769 = vpop.f32.mrf.mxu0
  %v770 = vadd.f32 %v601, %v769
  %771 = vmatmul.bf16.gmra.mxu0 %v332
  %v772 = vpop.f32.mrf.mxu0
  %v773 = vadd.f32 %v604, %v772
  %v774 = vpop.f32.mrf.mxu0
  %v775 = vadd.f32 %v606, %v774
  %776 = vmatmul.bf16.gmra.mxu0 %v334
  %v777 = vpop.f32.mrf.mxu0
  %v778 = vadd.f32 %v609, %v777
  %v779 = vpop.f32.mrf.mxu0
  %v780 = vadd.f32 %v611, %v779
  %781 = vmatmul.bf16.gmra.mxu0 %v336
  %v782 = vpop.f32.mrf.mxu0
  %v783 = vadd.f32 %v614, %v782
  %v784 = vpop.f32.mrf.mxu0
  %v785 = vadd.f32 %v616, %v784
  %786 = vmatmul.bf16.gmra.mxu0 %v338
  %v787 = vpop.f32.mrf.mxu0
  %v788 = vadd.f32 %v619, %v787
  %v789 = vpop.f32.mrf.mxu0
  %v790 = vadd.f32 %v621, %v789
  %791 = vmatmul.bf16.gmra.mxu0 %v340
  %v792 = vpop.f32.mrf.mxu0
  %v793 = vadd.f32 %v624, %v792
  %v794 = vpop.f32.mrf.mxu0
  %v795 = vadd.f32 %v626, %v794
  %796 = vmatmul.bf16.gmra.mxu0 %v342
  %v797 = vpop.f32.mrf.mxu0
  %v798 = vadd.f32 %v629, %v797
  %v799 = vpop.f32.mrf.mxu0
  %v800 = vadd.f32 %v631, %v799
  %801 = vmatmul.bf16.gmra.mxu0 %v344
  %v802 = vpop.f32.mrf.mxu0
  %v803 = vadd.f32 %v634, %v802
  %v804 = vpop.f32.mrf.mxu0
  %v805 = vadd.f32 %v636, %v804
  %806 = vmatmul.bf16.gmra.mxu0 %v346
  %v807 = vpop.f32.mrf.mxu0
  %v808 = vadd.f32 %v639, %v807
  %v809 = vpop.f32.mrf.mxu0
  %v810 = vadd.f32 %v641, %v809
  %811 = vmatmul.bf16.gmra.mxu0 %v348
  %v812 = vpop.f32.mrf.mxu0
  %v813 = vadd.f32 %v644, %v812
  %v814 = vpop.f32.mrf.mxu0
  %v815 = vadd.f32 %v646, %v814
  %816 = vmatmul.bf16.gmra.mxu0 %v350
  %v817 = vpop.f32.mrf.mxu0
  %v818 = vadd.f32 %v649, %v817
  %v819 = vpop.f32.mrf.mxu0
  %v820 = vadd.f32 %v651, %v819
  %821 = vmatmul.bf16.gmra.mxu0 %v352
  %v822 = vpop.f32.mrf.mxu0
  %v823 = vadd.f32 %v654, %v822
  %v824 = vpop.f32.mrf.mxu0
  %v825 = vadd.f32 %v656, %v824
  %826 = vmatmul.bf16.gmra.mxu0 %v354
  %v827 = vpop.f32.mrf.mxu0
  %v828 = vadd.f32 %v659, %v827
  %v829 = vpop.f32.mrf.mxu0
  %v830 = vadd.f32 %v661, %v829
  %831 = vmatmul.bf16.gmra.mxu0 %v356
  %v832 = vpop.f32.mrf.mxu0
  %v833 = vadd.f32 %v664, %v832
  %v834 = vpop.f32.mrf.mxu0
  %v835 = vadd.f32 %v666, %v834
  %836 = vmatmul.bf16.gmra.mxu0 %v358
  %v837 = vpop.f32.mrf.mxu0
  %v838 = vadd.f32 %v669, %v837
  %v839 = vpop.f32.mrf.mxu0
  %v840 = vadd.f32 %v671, %v839
  %841 = vmatmul.bf16.gmra.mxu0 %v360
  %v842 = vpop.f32.mrf.mxu0
  %v843 = vadd.f32 %v674, %v842
  %v844 = vpop.f32.mrf.mxu0
  %v845 = vadd.f32 %v676, %v844
  %846 = vmatmul.bf16.gmra.mxu0 %v362
  %v847 = vpop.f32.mrf.mxu0
  %v848 = vadd.f32 %v679, %v847
  %v849 = vpop.f32.mrf.mxu0
  %v850 = vadd.f32 %v681, %v849
  %851 = vmatmul.bf16.gmra.mxu0 %v364
  %v852 = vpop.f32.mrf.mxu0
  %v853 = vadd.f32 %v684, %v852
  %v854 = vpop.f32.mrf.mxu0
  %v855 = vadd.f32 %v686, %v854
  %856 = vmatmul.bf16.gmra.mxu0 %v366
  %v857 = vpop.f32.mrf.mxu0
  %v858 = vadd.f32 %v689, %v857
  %v859 = vpop.f32.mrf.mxu0
  %v860 = vadd.f32 %v691, %v859
  %861 = vmatmul.bf16.gmra.mxu0 %v368
  %v862 = vpop.f32.mrf.mxu0
  %v863 = vadd.f32 %v694, %v862
  %v864 = vpop.f32.mrf.mxu0
  %v865 = vadd.f32 %v696, %v864
  %866 = vdwg.mxu0
  %v867 = vld [vmem:[%s2] sm:$0x1]
  %v869 = vperm.slane %v867, 0
  %v871 = vmul.f32 %v708, %v869
  %v872 = vmul.f32 %v710, %v869
  %v873 = vmul.f32 %v713, %v869
  %v874 = vmul.f32 %v715, %v869
  %v875 = vmul.f32 %v718, %v869
  %v876 = vmul.f32 %v720, %v869
  %v877 = vmul.f32 %v723, %v869
  %v878 = vmul.f32 %v725, %v869
  %v879 = vmul.f32 %v728, %v869
  %v880 = vmul.f32 %v730, %v869
  %v881 = vmul.f32 %v733, %v869
  %v882 = vmul.f32 %v735, %v869
  %v883 = vmul.f32 %v738, %v869
  %v884 = vmul.f32 %v740, %v869
  %v885 = vmul.f32 %v743, %v869
  %v886 = vmul.f32 %v745, %v869
  %v887 = vmul.f32 %v748, %v869
  %v888 = vmul.f32 %v750, %v869
  %v889 = vmul.f32 %v753, %v869
  %v890 = vmul.f32 %v755, %v869
  %v891 = vmul.f32 %v758, %v869
  %v892 = vmul.f32 %v760, %v869
  %v893 = vmul.f32 %v763, %v869
  %v894 = vmul.f32 %v765, %v869
  %v895 = vmul.f32 %v768, %v869
  %v896 = vmul.f32 %v770, %v869
  %v897 = vmul.f32 %v773, %v869
  %v898 = vmul.f32 %v775, %v869
  %v899 = vmul.f32 %v778, %v869
  %v900 = vmul.f32 %v780, %v869
  %v901 = vmul.f32 %v783, %v869
  %v902 = vmul.f32 %v785, %v869
  %v903 = vmul.f32 %v788, %v869
  %v904 = vmul.f32 %v790, %v869
  %v905 = vmul.f32 %v793, %v869
  %v906 = vmul.f32 %v795, %v869
  %v907 = vmul.f32 %v798, %v869
  %v908 = vmul.f32 %v800, %v869
  %v909 = vmul.f32 %v803, %v869
  %v910 = vmul.f32 %v805, %v869
  %v911 = vmul.f32 %v808, %v869
  %v912 = vmul.f32 %v810, %v869
  %v913 = vmul.f32 %v813, %v869
  %v914 = vmul.f32 %v815, %v869
  %v915 = vmul.f32 %v818, %v869
  %v916 = vmul.f32 %v820, %v869
  %v917 = vmul.f32 %v823, %v869
  %v918 = vmul.f32 %v825, %v869
  %v919 = vmul.f32 %v828, %v869
  %v920 = vmul.f32 %v830, %v869
  %v921 = vmul.f32 %v833, %v869
  %v922 = vmul.f32 %v835, %v869
  %v923 = vmul.f32 %v838, %v869
  %v924 = vmul.f32 %v840, %v869
  %v925 = vmul.f32 %v843, %v869
  %v926 = vmul.f32 %v845, %v869
  %v927 = vmul.f32 %v848, %v869
  %v928 = vmul.f32 %v850, %v869
  %v929 = vmul.f32 %v853, %v869
  %v930 = vmul.f32 %v855, %v869
  %v931 = vmul.f32 %v858, %v869
  %v932 = vmul.f32 %v860, %v869
  %v933 = vmul.f32 %v863, %v869
  %v934 = vmul.f32 %v865, %v869
  %v935 = vld [vmem:[%s3] sm:$0x1]
  %v937 = vperm.slane %v935, 0
  %v939 = vadd.f32 %v871, %v937
  %v940 = vadd.f32 %v872, %v937
  %v941 = vadd.f32 %v873, %v937
  %v942 = vadd.f32 %v874, %v937
  %v943 = vadd.f32 %v875, %v937
  %v944 = vadd.f32 %v876, %v937
  %v945 = vadd.f32 %v877, %v937
  %v946 = vadd.f32 %v878, %v937
  %v947 = vadd.f32 %v879, %v937
  %v948 = vadd.f32 %v880, %v937
  %v949 = vadd.f32 %v881, %v937
  %v950 = vadd.f32 %v882, %v937
  %v951 = vadd.f32 %v883, %v937
  %v952 = vadd.f32 %v884, %v937
  %v953 = vadd.f32 %v885, %v937
  %v954 = vadd.f32 %v886, %v937
  %v955 = vadd.f32 %v887, %v937
  %v956 = vadd.f32 %v888, %v937
  %v957 = vadd.f32 %v889, %v937
  %v958 = vadd.f32 %v890, %v937
  %v959 = vadd.f32 %v891, %v937
  %v960 = vadd.f32 %v892, %v937
  %v961 = vadd.f32 %v893, %v937
  %v962 = vadd.f32 %v894, %v937
  %v963 = vadd.f32 %v895, %v937
  %v964 = vadd.f32 %v896, %v937
  %v965 = vadd.f32 %v897, %v937
  %v966 = vadd.f32 %v898, %v937
  %v967 = vadd.f32 %v899, %v937
  %v968 = vadd.f32 %v900, %v937
  %v969 = vadd.f32 %v901, %v937
  %v970 = vadd.f32 %v902, %v937
  %v971 = vadd.f32 %v903, %v937
  %v972 = vadd.f32 %v904, %v937
  %v973 = vadd.f32 %v905, %v937
  %v974 = vadd.f32 %v906, %v937
  %v975 = vadd.f32 %v907, %v937
  %v976 = vadd.f32 %v908, %v937
  %v977 = vadd.f32 %v909, %v937
  %v978 = vadd.f32 %v910, %v937
  %v979 = vadd.f32 %v911, %v937
  %v980 = vadd.f32 %v912, %v937
  %v981 = vadd.f32 %v913, %v937
  %v982 = vadd.f32 %v914, %v937
  %v983 = vadd.f32 %v915, %v937
  %v984 = vadd.f32 %v916, %v937
  %v985 = vadd.f32 %v917, %v937
  %v986 = vadd.f32 %v918, %v937
  %v987 = vadd.f32 %v919, %v937
  %v988 = vadd.f32 %v920, %v937
  %v989 = vadd.f32 %v921, %v937
  %v990 = vadd.f32 %v922, %v937
  %v991 = vadd.f32 %v923, %v937
  %v992 = vadd.f32 %v924, %v937
  %v993 = vadd.f32 %v925, %v937
  %v994 = vadd.f32 %v926, %v937
  %v995 = vadd.f32 %v927, %v937
  %v996 = vadd.f32 %v928, %v937
  %v997 = vadd.f32 %v929, %v937
  %v998 = vadd.f32 %v930, %v937
  %v999 = vadd.f32 %v931, %v937
  %v1000 = vadd.f32 %v932, %v937
  %v1001 = vadd.f32 %v933, %v937
  %v1002 = vadd.f32 %v934, %v937
  %v1003 = vmax.f32 %v939, 0.0
  %v1004 = vmax.f32 %v940, 0.0
  %v1005 = vmax.f32 %v941, 0.0
  %v1006 = vmax.f32 %v942, 0.0
  %v1007 = vmax.f32 %v943, 0.0
  %v1008 = vmax.f32 %v944, 0.0
  %v1009 = vmax.f32 %v945, 0.0
  %v1010 = vmax.f32 %v946, 0.0
  %v1011 = vmax.f32 %v947, 0.0
  %v1012 = vmax.f32 %v948, 0.0
  %v1013 = vmax.f32 %v949, 0.0
  %v1014 = vmax.f32 %v950, 0.0
  %v1015 = vmax.f32 %v951, 0.0
  %v1016 = vmax.f32 %v952, 0.0
  %v1017 = vmax.f32 %v953, 0.0
  %v1018 = vmax.f32 %v954, 0.0
  %v1019 = vmax.f32 %v955, 0.0
  %v1020 = vmax.f32 %v956, 0.0
  %v1021 = vmax.f32 %v957, 0.0
  %v1022 = vmax.f32 %v958, 0.0
  %v1023 = vmax.f32 %v959, 0.0
  %v1024 = vmax.f32 %v960, 0.0
  %v1025 = vmax.f32 %v961, 0.0
  %v1026 = vmax.f32 %v962, 0.0
  %v1027 = vmax.f32 %v963, 0.0
  %v1028 = vmax.f32 %v964, 0.0
  %v1029 = vmax.f32 %v965, 0.0
  %v1030 = vmax.f32 %v966, 0.0
  %v1031 = vmax.f32 %v967, 0.0
  %v1032 = vmax.f32 %v968, 0.0
  %v1033 = vmax.f32 %v969, 0.0
  %v1034 = vmax.f32 %v970, 0.0
  %v1035 = vmax.f32 %v971, 0.0
  %v1036 = vmax.f32 %v972, 0.0
  %v1037 = vmax.f32 %v973, 0.0
  %v1038 = vmax.f32 %v974, 0.0
  %v1039 = vmax.f32 %v975, 0.0
  %v1040 = vmax.f32 %v976, 0.0
  %v1041 = vmax.f32 %v977, 0.0
  %v1042 = vmax.f32 %v978, 0.0
  %v1043 = vmax.f32 %v979, 0.0
  %v1044 = vmax.f32 %v980, 0.0
  %v1045 = vmax.f32 %v981, 0.0
  %v1046 = vmax.f32 %v982, 0.0
  %v1047 = vmax.f32 %v983, 0.0
  %v1048 = vmax.f32 %v984, 0.0
  %v1049 = vmax.f32 %v985, 0.0
  %v1050 = vmax.f32 %v986, 0.0
  %v1051 = vmax.f32 %v987, 0.0
  %v1052 = vmax.f32 %v988, 0.0
  %v1053 = vmax.f32 %v989, 0.0
  %v1054 = vmax.f32 %v990, 0.0
  %v1055 = vmax.f32 %v991, 0.0
  %v1056 = vmax.f32 %v992, 0.0
  %v1057 = vmax.f32 %v993, 0.0
  %v1058 = vmax.f32 %v994, 0.0
  %v1059 = vmax.f32 %v995, 0.0
  %v1060 = vmax.f32 %v996, 0.0
  %v1061 = vmax.f32 %v997, 0.0
  %v1062 = vmax.f32 %v998, 0.0
  %v1063 = vmax.f32 %v999, 0.0
  %v1064 = vmax.f32 %v1000, 0.0
  %v1065 = vmax.f32 %v1001, 0.0
  %v1066 = vmax.f32 %v1002, 0.0
  %v1067 = vpack.c.bf16 %v1003, %v1003
  %v1068 = vpack.c.bf16 %v1004, %v1004
  %v1069 = vpack.c.bf16 %v1005, %v1005
  %v1070 = vpack.c.bf16 %v1006, %v1006
  %v1071 = vpack.c.bf16 %v1007, %v1007
  %v1072 = vpack.c.bf16 %v1008, %v1008
  %v1073 = vpack.c.bf16 %v1009, %v1009
  %v1074 = vpack.c.bf16 %v1010, %v1010
  %v1075 = vpack.c.bf16 %v1011, %v1011
  %v1076 = vpack.c.bf16 %v1012, %v1012
  %v1077 = vpack.c.bf16 %v1013, %v1013
  %v1078 = vpack.c.bf16 %v1014, %v1014
  %v1079 = vpack.c.bf16 %v1015, %v1015
  %v1080 = vpack.c.bf16 %v1016, %v1016
  %v1081 = vpack.c.bf16 %v1017, %v1017
  %v1082 = vpack.c.bf16 %v1018, %v1018
  %v1083 = vpack.c.bf16 %v1019, %v1019
  %v1084 = vpack.c.bf16 %v1020, %v1020
  %v1085 = vpack.c.bf16 %v1021, %v1021
  %v1086 = vpack.c.bf16 %v1022, %v1022
  %v1087 = vpack.c.bf16 %v1023, %v1023
  %v1088 = vpack.c.bf16 %v1024, %v1024
  %v1089 = vpack.c.bf16 %v1025, %v1025
  %v1090 = vpack.c.bf16 %v1026, %v1026
  %v1091 = vpack.c.bf16 %v1027, %v1027
  %v1092 = vpack.c.bf16 %v1028, %v1028
  %v1093 = vpack.c.bf16 %v1029, %v1029
  %v1094 = vpack.c.bf16 %v1030, %v1030
  %v1095 = vpack.c.bf16 %v1031, %v1031
  %v1096 = vpack.c.bf16 %v1032, %v1032
  %v1097 = vpack.c.bf16 %v1033, %v1033
  %v1098 = vpack.c.bf16 %v1034, %v1034
  %v1099 = vpack.c.bf16 %v1035, %v1035
  %v1100 = vpack.c.bf16 %v1036, %v1036
  %v1101 = vpack.c.bf16 %v1037, %v1037
  %v1102 = vpack.c.bf16 %v1038, %v1038
  %v1103 = vpack.c.bf16 %v1039, %v1039
  %v1104 = vpack.c.bf16 %v1040, %v1040
  %v1105 = vpack.c.bf16 %v1041, %v1041
  %v1106 = vpack.c.bf16 %v1042, %v1042
  %v1107 = vpack.c.bf16 %v1043, %v1043
  %v1108 = vpack.c.bf16 %v1044, %v1044
  %v1109 = vpack.c.bf16 %v1045, %v1045
  %v1110 = vpack.c.bf16 %v1046, %v1046
  %v1111 = vpack.c.bf16 %v1047, %v1047
  %v1112 = vpack.c.bf16 %v1048, %v1048
  %v1113 = vpack.c.bf16 %v1049, %v1049
  %v1114 = vpack.c.bf16 %v1050, %v1050
  %v1115 = vpack.c.bf16 %v1051, %v1051
  %v1116 = vpack.c.bf16 %v1052, %v1052
  %v1117 = vpack.c.bf16 %v1053, %v1053
  %v1118 = vpack.c.bf16 %v1054, %v1054
  %v1119 = vpack.c.bf16 %v1055, %v1055
  %v1120 = vpack.c.bf16 %v1056, %v1056
  %v1121 = vpack.c.bf16 %v1057, %v1057
  %v1122 = vpack.c.bf16 %v1058, %v1058
  %v1123 = vpack.c.bf16 %v1059, %v1059
  %v1124 = vpack.c.bf16 %v1060, %v1060
  %v1125 = vpack.c.bf16 %v1061, %v1061
  %v1126 = vpack.c.bf16 %v1062, %v1062
  %v1127 = vpack.c.bf16 %v1063, %v1063
  %v1128 = vpack.c.bf16 %v1064, %v1064
  %v1129 = vpack.c.bf16 %v1065, %v1065
  %v1130 = vpack.c.bf16 %v1066, %v1066
  %1131 = vst [vmem:[%s4] sm:$0xf] %v1067
  %1132 = vst [vmem:[%s4 + $0x4] sm:$0xf] %v1068
  %1133 = vst [vmem:[%s4 + $0x8] sm:$0xf] %v1069
  %1134 = vst [vmem:[%s4 + $0xc] sm:$0xf] %v1070
  %1135 = vst [vmem:[%s4 + $0x10] sm:$0xf] %v1071
  %1136 = vst [vmem:[%s4 + $0x14] sm:$0xf] %v1072
  %1137 = vst [vmem:[%s4 + $0x18] sm:$0xf] %v1073
  %1138 = vst [vmem:[%s4 + $0x1c] sm:$0xf] %v1074
  %1139 = vst [vmem:[%s4 + $0x20] sm:$0xf] %v1075
  %1140 = vst [vmem:[%s4 + $0x24] sm:$0xf] %v1076
  %1141 = vst [vmem:[%s4 + $0x28] sm:$0xf] %v1077
  %1142 = vst [vmem:[%s4 + $0x2c] sm:$0xf] %v1078
  %1143 = vst [vmem:[%s4 + $0x30] sm:$0xf] %v1079
  %1144 = vst [vmem:[%s4 + $0x34] sm:$0xf] %v1080
  %1145 = vst [vmem:[%s4 + $0x38] sm:$0xf] %v1081
  %1146 = vst [vmem:[%s4 + $0x3c] sm:$0xf] %v1082
  %1147 = vst [vmem:[%s4 + $0x40] sm:$0xf] %v1083
  %1148 = vst [vmem:[%s4 + $0x44] sm:$0xf] %v1084
  %1149 = vst [vmem:[%s4 + $0x48] sm:$0xf] %v1085
  %1150 = vst [vmem:[%s4 + $0x4c] sm:$0xf] %v1086
  %1151 = vst [vmem:[%s4 + $0x50] sm:$0xf] %v1087
  %1152 = vst [vmem:[%s4 + $0x54] sm:$0xf] %v1088
  %1153 = vst [vmem:[%s4 + $0x58] sm:$0xf] %v1089
  %1154 = vst [vmem:[%s4 + $0x5c] sm:$0xf] %v1090
  %1155 = vst [vmem:[%s4 + $0x60] sm:$0xf] %v1091
  %1156 = vst [vmem:[%s4 + $0x64] sm:$0xf] %v1092
  %1157 = vst [vmem:[%s4 + $0x68] sm:$0xf] %v1093
  %1158 = vst [vmem:[%s4 + $0x6c] sm:$0xf] %v1094
  %1159 = vst [vmem:[%s4 + $0x70] sm:$0xf] %v1095
  %1160 = vst [vmem:[%s4 + $0x74] sm:$0xf] %v1096
  %1161 = vst [vmem:[%s4 + $0x78] sm:$0xf] %v1097
  %1162 = vst [vmem:[%s4 + $0x7c] sm:$0xf] %v1098
  %1163 = vst [vmem:[%s4 + $0x80] sm:$0xf] %v1099
  %1164 = vst [vmem:[%s4 + $0x84] sm:$0xf] %v1100
  %1165 = vst [vmem:[%s4 + $0x88] sm:$0xf] %v1101
  %1166 = vst [vmem:[%s4 + $0x8c] sm:$0xf] %v1102
  %1167 = vst [vmem:[%s4 + $0x90] sm:$0xf] %v1103
  %1168 = vst [vmem:[%s4 + $0x94] sm:$0xf] %v1104
  %1169 = vst [vmem:[%s4 + $0x98] sm:$0xf] %v1105
  %1170 = vst [vmem:[%s4 + $0x9c] sm:$0xf] %v1106
  %1171 = vst [vmem:[%s4 + $0xa0] sm:$0xf] %v1107
  %1172 = vst [vmem:[%s4 + $0xa4] sm:$0xf] %v1108
  %1173 = vst [vmem:[%s4 + $0xa8] sm:$0xf] %v1109
  %1174 = vst [vmem:[%s4 + $0xac] sm:$0xf] %v1110
  %1175 = vst [vmem:[%s4 + $0xb0] sm:$0xf] %v1111
  %1176 = vst [vmem:[%s4 + $0xb4] sm:$0xf] %v1112
  %1177 = vst [vmem:[%s4 + $0xb8] sm:$0xf] %v1113
  %1178 = vst [vmem:[%s4 + $0xbc] sm:$0xf] %v1114
  %1179 = vst [vmem:[%s4 + $0xc0] sm:$0xf] %v1115
  %1180 = vst [vmem:[%s4 + $0xc4] sm:$0xf] %v1116
  %1181 = vst [vmem:[%s4 + $0xc8] sm:$0xf] %v1117
  %1182 = vst [vmem:[%s4 + $0xcc] sm:$0xf] %v1118
  %1183 = vst [vmem:[%s4 + $0xd0] sm:$0xf] %v1119
  %1184 = vst [vmem:[%s4 + $0xd4] sm:$0xf] %v1120
  %1185 = vst [vmem:[%s4 + $0xd8] sm:$0xf] %v1121
  %1186 = vst [vmem:[%s4 + $0xdc] sm:$0xf] %v1122
  %1187 = vst [vmem:[%s4 + $0xe0] sm:$0xf] %v1123
  %1188 = vst [vmem:[%s4 + $0xe4] sm:$0xf] %v1124
  %1189 = vst [vmem:[%s4 + $0xe8] sm:$0xf] %v1125
  %1190 = vst [vmem:[%s4 + $0xec] sm:$0xf] %v1126
  %1191 = vst [vmem:[%s4 + $0xf0] sm:$0xf] %v1127
  %1192 = vst [vmem:[%s4 + $0xf4] sm:$0xf] %v1128
  %1193 = vst [vmem:[%s4 + $0xf8] sm:$0xf] %v1129
  %1194 = vst [vmem:[%s4 + $0xfc] sm:$0xf] %v1130
  // Predicated region
  $region18: #{_stem.2} parent=0 // pred_check
    _
  $region19: #{_stem.2} parent=0 // pred_check_branch
    %1196 = sbr.rel (0) target = $region21
  $region20: #{_stem.2} parent=0 // pred_region
    _
  $region21: #{_stem.2} parent=0 // pred_fallthru
    _
  // Predicated region
  $region22: #{_stem.2} parent=0 // pred_check
    _
  $region23: #{_stem.2} parent=0 // pred_check_branch
    %1198 = sbr.rel (0) target = $region25
  $region24: #{_stem.2} parent=0 // pred_region
    _
  $region25: #{_stem.2} parent=0 // pred_fallthru
    _

</llo_original>
